<compile_context>
chip_gen: v6e
topology: v6e:2x2x1
jax: 0.10.0
libtpu: 0.0.40
codegen_flags: <defaults>
</compile_context>

<pallas_src>
import functools

import jax
import jax.numpy as jnp
from jax.experimental import pallas as pl
from jax.experimental.pallas import tpu as pltpu

# ----------------------------- configuration -------------------------------
QA_SIZE = 7
METE_SIZE = 5
CTX_SIZE = 6
HIDDEN = 32
FORECAST_SIZE = 7           # must equal QA_SIZE for the final y_pre reshape
FORECAST_TIME = 6
MAP_SIZE = (4, 4)           # small synthetic map (original default is (15, 10))
ALPHA = 0.2                 # leaky-relu negative slope (activate_alpha)


# ------------------------------ Pallas kernel -------------------------------
def _fused_kernel(adj_big_ref, adj_last_ref,
                  qa_ref, meo_ref, cxo_ref, mef_ref, cxf_ref,
                  wq_ref, wm_ref, wc_ref, ba_ref,
                  wg_ref, wgm_ref, wgc_ref, bg_ref,
                  wop_ref, bop_ref,
                  proj_ref, loss_ref,
                  *, alpha, t, b, n, h):
    """Fused SSH_GNN forward: u, GNN output, y_pre and losses in one pass."""
    ntb = t * b * n
    f32 = jnp.float32

    # --- ApproximateModel ---------------------------------------------------
    # TODO(synk): ApproximateModel source unavailable; fused per-cell linear
    # over [qa, mete, ctx], weights split per input group so the concatenated
    # feature tensor is never materialized.
    u = (jnp.dot(qa_ref[...], wq_ref[...], preferred_element_type=f32)
         + jnp.dot(meo_ref[...], wm_ref[...], preferred_element_type=f32)
         + jnp.dot(cxo_ref[...], wc_ref[...], preferred_element_type=f32)
         + ba_ref[...])
    u = jnp.where(u > 0, u, alpha * u)                       # (T*B*N, H)

    # --- NeighborPredict loss -------------------------------------------------
    # TODO(synk): NeighborPredict source unavailable; adjacency-reconstruction
    # MSE.  adj_big = kron(I_{T*B}, A) turns the per-(t,b) slice A @ u into a
    # single 2-D MXU matmul (no batched einsum, no lane relayouts).
    rec = jnp.dot(adj_big_ref[...], u, preferred_element_type=f32)
    diff = rec - u
    inv_cnt = 1.0 / float(ntb * h)
    loss_p = jnp.sum(diff * diff, keepdims=True) * inv_cnt   # (1, 1)

    # --- ContextualInference loss ----------------------------------------------
    # TODO(synk): ContextualInference source unavailable; proxy regulariser
    # fused here so u is never re-read from HBM.
    loss_q = jnp.sum(u * u, keepdims=True) * inv_cnt         # (1, 1)
    loss_ref[...] = loss_p + loss_q

    # --- HierarchicalGraphModel --------------------------------------------------
    # TODO(synk): HierarchicalGraphModel source unavailable; one-hop graph
    # propagation of the last observed hidden state plus a projection of the
    # forecast-horizon mete/ctx covariates for each future step.
    u_last = u.reshape(t, b * n, h)[t - 1]                   # (B*N, H)
    agg = jnp.dot(adj_last_ref[...], u_last,                  # kron(I_B, A) @ u_last
                  preferred_element_type=f32)
    base = jnp.dot(agg, wg_ref[...], preferred_element_type=f32)       # (B*N, H)
    cov = (jnp.dot(mef_ref[...], wgm_ref[...], preferred_element_type=f32)
           + jnp.dot(cxf_ref[...], wgc_ref[...], preferred_element_type=f32))
    g = cov.reshape(t, b * n, h) + base[None, :, :] + bg_ref[...].reshape(1, 1, h)
    g = jnp.where(g > 0, g, alpha * g)
    g = g.reshape(t * b * n, h)                              # (T*B*N, H)

    # --- merged output projection -------------------------------------------------
    # rows = [u ; g], cols = [w_pre | w_out] -> one (2*T*B*N, 2F) matmul.
    # Slicing of the two halves happens in the wrapper (keeps kernel stores
    # sublane-aligned, no in-kernel lane slicing).
    cat = jnp.concatenate([u, g], axis=0)
    proj_ref[...] = (jnp.dot(cat, wop_ref[...], preferred_element_type=f32)
                     + bop_ref[...])


# ------------------------------ model pieces --------------------------------
def get_adj_mat(map_size):
    """Gaussian adjacency exp(-d^2 / std(d)^2) — one-off setup, plain JAX."""
    mx, my = map_size
    n = mx * my
    ids = jnp.arange(n)
    # TODO(synk): get_latlon_by_id was not provided; use grid row/col as lat/lon.
    lat = (ids // my).astype(jnp.float32)
    lon = (ids % my).astype(jnp.float32)
    d = jnp.sqrt((lat[:, None] - lat[None, :]) ** 2 +
                 (lon[:, None] - lon[None, :]) ** 2)
    delta = jnp.std(d)           # reference uses np.std (population std)
    return jnp.exp(-(d * d) / (delta * delta + 1e-12))


def make_params(key):
    ks = jax.random.split(key, 12)

    def init(k, shape, scale=0.1):
        return (scale * jax.random.normal(k, shape)).astype(jnp.float32)

    return {
        'w_app_qa':   init(ks[0], (QA_SIZE, HIDDEN)),
        'w_app_mete': init(ks[1], (METE_SIZE, HIDDEN)),
        'w_app_ctx':  init(ks[2], (CTX_SIZE, HIDDEN)),
        'b_app':      init(ks[3], (1, HIDDEN)),
        'w_gnn':      init(ks[4], (HIDDEN, HIDDEN)),
        'b_gnn':      init(ks[5], (1, HIDDEN)),
        'w_gnn_mete': init(ks[6], (METE_SIZE, HIDDEN)),
        'w_gnn_ctx':  init(ks[7], (CTX_SIZE, HIDDEN)),
        'w_out':      init(ks[8], (HIDDEN, FORECAST_SIZE)),
        'b_out':      init(ks[9], (1, FORECAST_SIZE)),
        'w_pre':      init(ks[10], (HIDDEN, FORECAST_SIZE)),   # predict_linear
        'b_pre':      init(ks[11], (1, FORECAST_SIZE)),
    }


def ssh_gnn_forward(qa_val, mete_val, ctx_val, params, adj):
    T, B, X, Y, QA = qa_val.shape
    N = X * Y
    H = HIDDEN
    F = FORECAST_SIZE
    NTB = T * B * N

    # flat time-major rows (contiguous reshapes only; nothing new materialized)
    qa_rows = qa_val.reshape(NTB, QA)
    meo_rows = mete_val[:T].reshape(NTB, METE_SIZE)
    cxo_rows = ctx_val[:T].reshape(NTB, CTX_SIZE)
    mef_rows = mete_val[T:2 * T].reshape(NTB, METE_SIZE)
    cxf_rows = ctx_val[T:2 * T].reshape(NTB, CTX_SIZE)

    # block-diagonal adjacencies: single 2-D MXU matmuls inside the kernel
    adj_big = jnp.kron(jnp.eye(T * B, dtype=adj.dtype), adj)   # (NTB, NTB)
    adj_last = jnp.kron(jnp.eye(B, dtype=adj.dtype), adj)      # (B*N, B*N)

    # merged output projection [w_pre | w_out] -> one lane-wider matmul
    w_op = jnp.concatenate([params['w_pre'], params['w_out']], axis=1)   # (H, 2F)
    b_op = jnp.concatenate([params['b_pre'], params['b_out']], axis=1)   # (1, 2F)

    args = (adj_big, adj_last,
            qa_rows, meo_rows, cxo_rows, mef_rows, cxf_rows,
            params['w_app_qa'], params['w_app_mete'], params['w_app_ctx'],
            params['b_app'],
            params['w_gnn'], params['w_gnn_mete'], params['w_gnn_ctx'],
            params['b_gnn'],
            w_op, b_op)

    vmem = lambda: pl.BlockSpec(memory_space=pltpu.MemorySpace.VMEM)
    proj, loss2d = pl.pallas_call(
        functools.partial(_fused_kernel, alpha=ALPHA, t=T, b=B, n=N, h=H),
        in_specs=[vmem() for _ in args],
        out_specs=(vmem(), vmem()),
        out_shape=(jax.ShapeDtypeStruct((2 * NTB, 2 * F), jnp.float32),
                   jax.ShapeDtypeStruct((1, 1), jnp.float32)),
    )(*args)

    # wrapper-side slicing of the merged projection
    y_pre = proj[:NTB, :F].reshape(T, B, X, Y, QA)          # predict_linear(u)
    gnn = proj[NTB:, F:].reshape(T, B, X, Y, F)             # GNN forecast steps

    # TODO(synk): HierarchicalGraphModel recurrence over forecast_time is
    # unavailable; extend the T covariate-driven steps by repeating the last.
    if FORECAST_TIME > T:
        pad = jnp.broadcast_to(gnn[-1:], (FORECAST_TIME - T, B, X, Y, F))
        output = jnp.concatenate([gnn, pad], axis=0)
    else:
        output = gnn[:FORECAST_TIME]

    loss_s = loss2d[0, 0]
    return output, y_pre, loss_s


# ------------------------- pure-JAX reference (check) ------------------------
def _reference_forward(qa_val, mete_val, ctx_val, params, adj):
    T, B, X, Y, QA = qa_val.shape
    N = X * Y
    F = FORECAST_SIZE
    qa_r = qa_val.reshape(T, B, N, QA)
    me_o = mete_val[:T].reshape(T, B, N, METE_SIZE)
    cx_o = ctx_val[:T].reshape(T, B, N, CTX_SIZE)
    u = (qa_r @ params['w_app_qa'] + me_o @ params['w_app_mete']
         + cx_o @ params['w_app_ctx'] + params['b_app'])
    u = jnp.where(u > 0, u, ALPHA * u)                       # (T,B,N,H)

    rec = jnp.einsum('nm,tbmh->tbnh', adj, u)
    loss_p = jnp.mean((rec - u) ** 2)
    loss_q = jnp.mean(u * u)

    u_last = u[-1]                                           # (B,N,H)
    agg = jnp.einsum('nm,bmh->bnh', adj, u_last)
    base = agg @ params['w_gnn']
    me_f = mete_val[T:2 * T].reshape(T, B, N, METE_SIZE)
    cx_f = ctx_val[T:2 * T].reshape(T, B, N, CTX_SIZE)
    cov = me_f @ params['w_gnn_mete'] + cx_f @ params['w_gnn_ctx']
    g = cov + base[None] + params['b_gnn']
    g = jnp.where(g > 0, g, ALPHA * g)
    gnn = (g @ params['w_out'] + params['b_out']).reshape(T, B, X, Y, F)
    y_pre = (u @ params['w_pre'] + params['b_pre']).reshape(T, B, X, Y, QA)

    if FORECAST_TIME > T:
        pad = jnp.broadcast_to(gnn[-1:], (FORECAST_TIME - T, B, X, Y, F))
        output = jnp.concatenate([gnn, pad], axis=0)
    else:
        output = gnn[:FORECAST_TIME]
    return output, y_pre, loss_p + loss_q


# --------------------------------- main --------------------------------------
if __name__ == "__main__":
    T, B = 4, 2
    MX, MY = MAP_SIZE

    root = jax.random.PRNGKey(0)
    kq, km, kc, kp = jax.random.split(root, 4)
    # qa: observed AQ values; mete/ctx cover observation + forecast horizon (2*T)
    qa_val = jax.random.normal(kq, (T, B, MX, MY, QA_SIZE), jnp.float32)
    mete_val = jax.random.normal(km, (2 * T, B, MX, MY, METE_SIZE), jnp.float32)
    ctx_val = jax.random.normal(kc, (2 * T, B, MX, MY, CTX_SIZE), jnp.float32)

    adj = get_adj_mat(MAP_SIZE)
    params = make_params(kp)

    fwd = jax.jit(ssh_gnn_forward)
    output, y_pre, loss_s = fwd(qa_val, mete_val, ctx_val, params, adj)
    jax.block_until_ready((output, y_pre, loss_s))

    assert output.shape == (FORECAST_TIME, B, MX, MY, FORECAST_SIZE)
    assert y_pre.shape == (T, B, MX, MY, QA_SIZE)
    assert loss_s.shape == ()

    # numerical check against a pure-JAX implementation of the same math
    ref_out, ref_y, ref_loss = _reference_forward(qa_val, mete_val, ctx_val,
                                                  params, adj)
    assert jnp.allclose(output, ref_out, rtol=2e-3, atol=2e-3)
    assert jnp.allclose(y_pre, ref_y, rtol=2e-3, atol=2e-3)
    assert jnp.allclose(loss_s, ref_loss, rtol=2e-3, atol=2e-3)

    print("KERNEL_OK")
</pallas_src>

<mosaic_0001>
module attributes {stable_mosaic.version = 11 : i64} {
  func.func @_fused_kernel(%arg0: memref<128x128xf32, #tpu.memory_space<vmem>>, %arg1: memref<32x32xf32, #tpu.memory_space<vmem>>, %arg2: memref<128x7xf32, #tpu.memory_space<vmem>>, %arg3: memref<128x5xf32, #tpu.memory_space<vmem>>, %arg4: memref<128x6xf32, #tpu.memory_space<vmem>>, %arg5: memref<128x5xf32, #tpu.memory_space<vmem>>, %arg6: memref<128x6xf32, #tpu.memory_space<vmem>>, %arg7: memref<7x32xf32, #tpu.memory_space<vmem>>, %arg8: memref<5x32xf32, #tpu.memory_space<vmem>>, %arg9: memref<6x32xf32, #tpu.memory_space<vmem>>, %arg10: memref<1x32xf32, #tpu.memory_space<vmem>>, %arg11: memref<32x32xf32, #tpu.memory_space<vmem>>, %arg12: memref<5x32xf32, #tpu.memory_space<vmem>>, %arg13: memref<6x32xf32, #tpu.memory_space<vmem>>, %arg14: memref<1x32xf32, #tpu.memory_space<vmem>>, %arg15: memref<32x14xf32, #tpu.memory_space<vmem>>, %arg16: memref<1x14xf32, #tpu.memory_space<vmem>>, %arg17: memref<256x14xf32, #tpu.memory_space<vmem>>, %arg18: memref<1x1xf32, #tpu.memory_space<vmem>>) attributes {dimension_semantics = [], scalar_prefetch = 0 : i64, scratch_operands = 0 : i64, tpu.core_type = #tpu.core_type<tc>} {
    %c0 = arith.constant 0 : index
    %c0_0 = arith.constant 0 : index
    %0 = vector.load %arg2[%c0, %c0_0] : memref<128x7xf32, #tpu.memory_space<vmem>>, vector<128x7xf32>
    %c0_1 = arith.constant 0 : index
    %c0_2 = arith.constant 0 : index
    %1 = vector.load %arg7[%c0_1, %c0_2] : memref<7x32xf32, #tpu.memory_space<vmem>>, vector<7x32xf32>
    %cst = arith.constant dense<0.000000e+00> : vector<128x32xf32>
    %2 = tpu.matmul %0, %1, %cst {dimension_numbers = #tpu.dot_dimension_numbers<[1], [0], [0], [1], [0, 0, 1, 1], [], []>} : vector<128x7xf32>, vector<7x32xf32>, vector<128x32xf32> -> vector<128x32xf32>
    %c0_3 = arith.constant 0 : index
    %c0_4 = arith.constant 0 : index
    %3 = vector.load %arg3[%c0_3, %c0_4] : memref<128x5xf32, #tpu.memory_space<vmem>>, vector<128x5xf32>
    %c0_5 = arith.constant 0 : index
    %c0_6 = arith.constant 0 : index
    %4 = vector.load %arg8[%c0_5, %c0_6] : memref<5x32xf32, #tpu.memory_space<vmem>>, vector<5x32xf32>
    %cst_7 = arith.constant dense<0.000000e+00> : vector<128x32xf32>
    %5 = tpu.matmul %3, %4, %cst_7 {dimension_numbers = #tpu.dot_dimension_numbers<[1], [0], [0], [1], [0, 0, 1, 1], [], []>} : vector<128x5xf32>, vector<5x32xf32>, vector<128x32xf32> -> vector<128x32xf32>
    %6 = arith.addf %2, %5 : vector<128x32xf32>
    %c0_8 = arith.constant 0 : index
    %c0_9 = arith.constant 0 : index
    %7 = vector.load %arg4[%c0_8, %c0_9] : memref<128x6xf32, #tpu.memory_space<vmem>>, vector<128x6xf32>
    %c0_10 = arith.constant 0 : index
    %c0_11 = arith.constant 0 : index
    %8 = vector.load %arg9[%c0_10, %c0_11] : memref<6x32xf32, #tpu.memory_space<vmem>>, vector<6x32xf32>
    %cst_12 = arith.constant dense<0.000000e+00> : vector<128x32xf32>
    %9 = tpu.matmul %7, %8, %cst_12 {dimension_numbers = #tpu.dot_dimension_numbers<[1], [0], [0], [1], [0, 0, 1, 1], [], []>} : vector<128x6xf32>, vector<6x32xf32>, vector<128x32xf32> -> vector<128x32xf32>
    %10 = arith.addf %6, %9 : vector<128x32xf32>
    %c0_13 = arith.constant 0 : index
    %c0_14 = arith.constant 0 : index
    %11 = vector.load %arg10[%c0_13, %c0_14] : memref<1x32xf32, #tpu.memory_space<vmem>>, vector<1x32xf32>
    %12 = vector.broadcast %11 : vector<1x32xf32> to vector<128x32xf32>
    %13 = arith.addf %10, %12 : vector<128x32xf32>
    %cst_15 = arith.constant 0.000000e+00 : f32
    %14 = vector.broadcast %cst_15 : f32 to vector<128x32xf32>
    %15 = arith.cmpf ogt, %13, %14 : vector<128x32xf32>
    %cst_16 = arith.constant 2.000000e-01 : f32
    %16 = vector.broadcast %cst_16 : f32 to vector<128x32xf32>
    %17 = arith.mulf %16, %13 : vector<128x32xf32>
    %18 = arith.select %15, %13, %17 : vector<128x32xi1>, vector<128x32xf32>
    %c0_17 = arith.constant 0 : index
    %c0_18 = arith.constant 0 : index
    %19 = vector.load %arg0[%c0_17, %c0_18] : memref<128x128xf32, #tpu.memory_space<vmem>>, vector<128x128xf32>
    %cst_19 = arith.constant dense<0.000000e+00> : vector<128x32xf32>
    %20 = tpu.matmul %19, %18, %cst_19 {dimension_numbers = #tpu.dot_dimension_numbers<[1], [0], [0], [1], [0, 0, 1, 1], [], []>} : vector<128x128xf32>, vector<128x32xf32>, vector<128x32xf32> -> vector<128x32xf32>
    %21 = arith.subf %20, %18 : vector<128x32xf32>
    %22 = arith.mulf %21, %21 : vector<128x32xf32>
    %23 = vector.shape_cast %22 : vector<128x32xf32> to vector<1x128x32xf32>
    %cst_20 = arith.constant dense<0.000000e+00> : vector<1xf32>
    %24 = vector.multi_reduction <add>, %23, %cst_20 [1, 2] : vector<1x128x32xf32> to vector<1xf32>
    %25 = vector.shape_cast %24 : vector<1xf32> to vector<1x1x1xf32>
    %26 = vector.extract %25[0, 0, 0] : f32 from vector<1x1x1xf32>
    %27 = vector.broadcast %26 : f32 to vector<1x1xf32>
    %cst_21 = arith.constant 2.44140625E-4 : f32
    %28 = vector.broadcast %cst_21 : f32 to vector<1x1xf32>
    %29 = arith.mulf %27, %28 : vector<1x1xf32>
    %30 = arith.mulf %18, %18 : vector<128x32xf32>
    %31 = vector.shape_cast %30 : vector<128x32xf32> to vector<1x128x32xf32>
    %cst_22 = arith.constant dense<0.000000e+00> : vector<1xf32>
    %32 = vector.multi_reduction <add>, %31, %cst_22 [1, 2] : vector<1x128x32xf32> to vector<1xf32>
    %33 = vector.shape_cast %32 : vector<1xf32> to vector<1x1x1xf32>
    %34 = vector.extract %33[0, 0, 0] : f32 from vector<1x1x1xf32>
    %35 = vector.broadcast %34 : f32 to vector<1x1xf32>
    %cst_23 = arith.constant 2.44140625E-4 : f32
    %36 = vector.broadcast %cst_23 : f32 to vector<1x1xf32>
    %37 = arith.mulf %35, %36 : vector<1x1xf32>
    %38 = arith.addf %29, %37 : vector<1x1xf32>
    %c0_24 = arith.constant 0 : index
    %c0_25 = arith.constant 0 : index
    %39 = vector.load %arg18[%c0_24, %c0_25] : memref<1x1xf32, #tpu.memory_space<vmem>>, vector<1x1xf32>
    tpu.vector_store %arg18[%c0_24, %c0_25], %38 {strides = array<i32>} : memref<1x1xf32, #tpu.memory_space<vmem>>, vector<1x1xf32>,
    %40 = vector.shape_cast %18 : vector<128x32xf32> to vector<4x32x32xf32>
    %41 = vector.extract_strided_slice %40 {offsets = [3, 0, 0], sizes = [1, 32, 32], strides = [1, 1, 1]} : vector<4x32x32xf32> to vector<1x32x32xf32>
    %42 = vector.shape_cast %41 : vector<1x32x32xf32> to vector<32x32xf32>
    %c0_26 = arith.constant 0 : index
    %c0_27 = arith.constant 0 : index
    %43 = vector.load %arg1[%c0_26, %c0_27] : memref<32x32xf32, #tpu.memory_space<vmem>>, vector<32x32xf32>
    %cst_28 = arith.constant dense<0.000000e+00> : vector<32x32xf32>
    %44 = tpu.matmul %43, %42, %cst_28 {dimension_numbers = #tpu.dot_dimension_numbers<[1], [0], [0], [1], [0, 0, 1, 1], [], []>} : vector<32x32xf32>, vector<32x32xf32>, vector<32x32xf32> -> vector<32x32xf32>
    %c0_29 = arith.constant 0 : index
    %c0_30 = arith.constant 0 : index
    %45 = vector.load %arg11[%c0_29, %c0_30] : memref<32x32xf32, #tpu.memory_space<vmem>>, vector<32x32xf32>
    %cst_31 = arith.constant dense<0.000000e+00> : vector<32x32xf32>
    %46 = tpu.matmul %44, %45, %cst_31 {dimension_numbers = #tpu.dot_dimension_numbers<[1], [0], [0], [1], [0, 0, 1, 1], [], []>} : vector<32x32xf32>, vector<32x32xf32>, vector<32x32xf32> -> vector<32x32xf32>
    %c0_32 = arith.constant 0 : index
    %c0_33 = arith.constant 0 : index
    %47 = vector.load %arg5[%c0_32, %c0_33] : memref<128x5xf32, #tpu.memory_space<vmem>>, vector<128x5xf32>
    %c0_34 = arith.constant 0 : index
    %c0_35 = arith.constant 0 : index
    %48 = vector.load %arg12[%c0_34, %c0_35] : memref<5x32xf32, #tpu.memory_space<vmem>>, vector<5x32xf32>
    %cst_36 = arith.constant dense<0.000000e+00> : vector<128x32xf32>
    %49 = tpu.matmul %47, %48, %cst_36 {dimension_numbers = #tpu.dot_dimension_numbers<[1], [0], [0], [1], [0, 0, 1, 1], [], []>} : vector<128x5xf32>, vector<5x32xf32>, vector<128x32xf32> -> vector<128x32xf32>
    %c0_37 = arith.constant 0 : index
    %c0_38 = arith.constant 0 : index
    %50 = vector.load %arg6[%c0_37, %c0_38] : memref<128x6xf32, #tpu.memory_space<vmem>>, vector<128x6xf32>
    %c0_39 = arith.constant 0 : index
    %c0_40 = arith.constant 0 : index
    %51 = vector.load %arg13[%c0_39, %c0_40] : memref<6x32xf32, #tpu.memory_space<vmem>>, vector<6x32xf32>
    %cst_41 = arith.constant dense<0.000000e+00> : vector<128x32xf32>
    %52 = tpu.matmul %50, %51, %cst_41 {dimension_numbers = #tpu.dot_dimension_numbers<[1], [0], [0], [1], [0, 0, 1, 1], [], []>} : vector<128x6xf32>, vector<6x32xf32>, vector<128x32xf32> -> vector<128x32xf32>
    %53 = arith.addf %49, %52 : vector<128x32xf32>
    %54 = vector.shape_cast %53 : vector<128x32xf32> to vector<4x32x32xf32>
    %55 = vector.shape_cast %46 : vector<32x32xf32> to vector<1x32x32xf32>
    %56 = vector.broadcast %55 : vector<1x32x32xf32> to vector<4x32x32xf32>
    %57 = arith.addf %54, %56 : vector<4x32x32xf32>
    %c0_42 = arith.constant 0 : index
    %c0_43 = arith.constant 0 : index
    %58 = vector.load %arg14[%c0_42, %c0_43] : memref<1x32xf32, #tpu.memory_space<vmem>>, vector<1x32xf32>
    %59 = vector.shape_cast %58 : vector<1x32xf32> to vector<1x1x32xf32>
    %60 = vector.broadcast %59 : vector<1x1x32xf32> to vector<4x32x32xf32>
    %61 = arith.addf %57, %60 : vector<4x32x32xf32>
    %cst_44 = arith.constant 0.000000e+00 : f32
    %62 = vector.broadcast %cst_44 : f32 to vector<4x32x32xf32>
    %63 = arith.cmpf ogt, %61, %62 : vector<4x32x32xf32>
    %cst_45 = arith.constant 2.000000e-01 : f32
    %64 = vector.broadcast %cst_45 : f32 to vector<4x32x32xf32>
    %65 = arith.mulf %64, %61 : vector<4x32x32xf32>
    %66 = arith.select %63, %61, %65 : vector<4x32x32xi1>, vector<4x32x32xf32>
    %67 = vector.shape_cast %66 : vector<4x32x32xf32> to vector<128x32xf32>
    %68 = tpu.concatenate %18, %67 in 0 : vector<128x32xf32>, vector<128x32xf32> -> vector<256x32xf32>
    %c0_46 = arith.constant 0 : index
    %c0_47 = arith.constant 0 : index
    %69 = vector.load %arg15[%c0_46, %c0_47] : memref<32x14xf32, #tpu.memory_space<vmem>>, vector<32x14xf32>
    %cst_48 = arith.constant dense<0.000000e+00> : vector<256x14xf32>
    %70 = tpu.matmul %68, %69, %cst_48 {dimension_numbers = #tpu.dot_dimension_numbers<[1], [0], [0], [1], [0, 0, 1, 1], [], []>} : vector<256x32xf32>, vector<32x14xf32>, vector<256x14xf32> -> vector<256x14xf32>
    %c0_49 = arith.constant 0 : index
    %c0_50 = arith.constant 0 : index
    %71 = vector.load %arg16[%c0_49, %c0_50] : memref<1x14xf32, #tpu.memory_space<vmem>>, vector<1x14xf32>
    %72 = vector.broadcast %71 : vector<1x14xf32> to vector<256x14xf32>
    %73 = arith.addf %70, %72 : vector<256x14xf32>
    %c0_51 = arith.constant 0 : index
    %c0_52 = arith.constant 0 : index
    %74 = vector.load %arg17[%c0_51, %c0_52] : memref<256x14xf32, #tpu.memory_space<vmem>>, vector<256x14xf32>
    tpu.vector_store %arg17[%c0_51, %c0_52], %73 {strides = array<i32>} : memref<256x14xf32, #tpu.memory_space<vmem>>, vector<256x14xf32>,
    return
  }
}

</mosaic_0001>

<llo_original>
// kernel: ssh_gnn_forward.1
$region0: #{ssh_gnn_forward.1}
  #allocation0 [shape = 'u32[]', space=smem, size = 0x4, offset = 0x4, fixed_abs, tag = 'smem constant byte address 0x4 - core index']
  #allocation1 [shape = 'u32[144,128]{1,0:T(1,128)}', space=vmem, size = 0x12000, scoped, tag = 'internal scratch']
  %s0 = inlined_call_operand.vmem [shape: f32[128,128], index: 0, kind: input, shape index: {}]
  %s1 = inlined_call_operand.vmem [shape: f32[32,32], index: 1, kind: input, shape index: {}]
  %s2 = inlined_call_operand.vmem [shape: f32[128,7], index: 2, kind: input, shape index: {}]
  %s3 = inlined_call_operand.vmem [shape: f32[128,5], index: 3, kind: input, shape index: {}]
  %s4 = inlined_call_operand.vmem [shape: f32[128,6], index: 4, kind: input, shape index: {}]
  %s5 = inlined_call_operand.vmem [shape: f32[128,5], index: 5, kind: input, shape index: {}]
  %s6 = inlined_call_operand.vmem [shape: f32[128,6], index: 6, kind: input, shape index: {}]
  %s7 = inlined_call_operand.vmem [shape: f32[7,32], index: 7, kind: input, shape index: {}]
  %s8 = inlined_call_operand.vmem [shape: f32[5,32], index: 8, kind: input, shape index: {}]
  %s9 = inlined_call_operand.vmem [shape: f32[6,32], index: 9, kind: input, shape index: {}]
  %s10 = inlined_call_operand.vmem [shape: f32[1,32], index: 10, kind: input, shape index: {}]
  %s11 = inlined_call_operand.vmem [shape: f32[32,32], index: 11, kind: input, shape index: {}]
  %s12 = inlined_call_operand.vmem [shape: f32[5,32], index: 12, kind: input, shape index: {}]
  %s13 = inlined_call_operand.vmem [shape: f32[6,32], index: 13, kind: input, shape index: {}]
  %s14 = inlined_call_operand.vmem [shape: f32[1,32], index: 14, kind: input, shape index: {}]
  %s15 = inlined_call_operand.vmem [shape: f32[32,14], index: 15, kind: input, shape index: {}]
  %s16 = inlined_call_operand.vmem [shape: f32[1,14], index: 16, kind: input, shape index: {}]
  %s17 = inlined_call_operand.vmem [shape: f32[256,14], index: 17, kind: output, shape index: {0}]
  %s18 = inlined_call_operand.hbm [shape: f32[1,1], index: 18, kind: output, shape index: {1}]
  %19 = xla_tuple %s17, %s18
  %s20 = sld [smem:[#allocation0]]
  $region86: #{ssh_gnn_forward.1} parent=0
    _
  %s22 = ssub.s32 1, %s20
  %s23 = scalar_select 0, %s22, %s20
  $region1: #{ssh_gnn_forward.1} parent=0
    #allocation2 [shape = 'u8[512]{0}', space=vmem, size = 0x400, scoped, tag = 'output window, operand 1, single buffered']
    #allocation3 [shape = 's32[1]{0}', space=sflag, size = 0x4, scoped, tag = 'scoped memory for ssh_gnn_forward.1']
    %24 = vsyncpa [#allocation3], 0
    // Predicated region
    $region2: #{ssh_gnn_forward.1} parent=1 // pred_check
      _
    $region3: #{ssh_gnn_forward.1} parent=1 // pred_check_branch
      %26 = sbr.rel (0) target = $region5
    $region4: #{ssh_gnn_forward.1} parent=1 // pred_region
      _
    $region5: #{ssh_gnn_forward.1} parent=1 // pred_fallthru
      _
    // Predicated region
    $region6: #{ssh_gnn_forward.1} parent=1 // pred_check
      _
    $region7: #{ssh_gnn_forward.1} parent=1 // pred_check_branch
      %28 = sbr.rel (0) target = $region9
    $region8: #{ssh_gnn_forward.1} parent=1 // pred_region
      _
    $region9: #{ssh_gnn_forward.1} parent=1 // pred_fallthru
      _
    // Predicated region
    $region10: #{ssh_gnn_forward.1} parent=1 // pred_check
      _
    $region11: #{ssh_gnn_forward.1} parent=1 // pred_check_branch
      %30 = sbr.rel (0) target = $region13
    $region12: #{ssh_gnn_forward.1} parent=1 // pred_region
      _
    $region13: #{ssh_gnn_forward.1} parent=1 // pred_fallthru
      _
    // Predicated region
    $region14: #{ssh_gnn_forward.1} parent=1 // pred_check
      _
    $region15: #{ssh_gnn_forward.1} parent=1 // pred_check_branch
      %32 = sbr.rel (0) target = $region17
    $region16: #{ssh_gnn_forward.1} parent=1 // pred_region
      _
    $region17: #{ssh_gnn_forward.1} parent=1 // pred_fallthru
      _
    // Predicated region
    $region18: #{ssh_gnn_forward.1} parent=1 // pred_check
      _
    $region19: #{ssh_gnn_forward.1} parent=1 // pred_check_branch
      %34 = sbr.rel (0) target = $region21
    $region20: #{ssh_gnn_forward.1} parent=1 // pred_region
      _
    $region21: #{ssh_gnn_forward.1} parent=1 // pred_fallthru
      _
    // Predicated region
    $region22: #{ssh_gnn_forward.1} parent=1 // pred_check
      _
    $region23: #{ssh_gnn_forward.1} parent=1 // pred_check_branch
      %36 = sbr.rel (0) target = $region25
    $region24: #{ssh_gnn_forward.1} parent=1 // pred_region
      _
    $region25: #{ssh_gnn_forward.1} parent=1 // pred_fallthru
      _
    // Predicated region
    $region26: #{ssh_gnn_forward.1} parent=1 // pred_check
      _
    $region27: #{ssh_gnn_forward.1} parent=1 // pred_check_branch
      %38 = sbr.rel (0) target = $region29
    $region28: #{ssh_gnn_forward.1} parent=1 // pred_region
      _
    $region29: #{ssh_gnn_forward.1} parent=1 // pred_fallthru
      _
    // Predicated region
    $region30: #{ssh_gnn_forward.1} parent=1 // pred_check
      _
    $region31: #{ssh_gnn_forward.1} parent=1 // pred_check_branch
      %40 = sbr.rel (0) target = $region33
    $region32: #{ssh_gnn_forward.1} parent=1 // pred_region
      _
    $region33: #{ssh_gnn_forward.1} parent=1 // pred_fallthru
      _
    // Predicated region
    $region34: #{ssh_gnn_forward.1} parent=1 // pred_check
      _
    $region35: #{ssh_gnn_forward.1} parent=1 // pred_check_branch
      %42 = sbr.rel (0) target = $region37
    $region36: #{ssh_gnn_forward.1} parent=1 // pred_region
      _
    $region37: #{ssh_gnn_forward.1} parent=1 // pred_fallthru
      _
    // Predicated region
    $region38: #{ssh_gnn_forward.1} parent=1 // pred_check
      _
    $region39: #{ssh_gnn_forward.1} parent=1 // pred_check_branch
      %44 = sbr.rel (0) target = $region41
    $region40: #{ssh_gnn_forward.1} parent=1 // pred_region
      _
    $region41: #{ssh_gnn_forward.1} parent=1 // pred_fallthru
      _
    // Predicated region
    $region42: #{ssh_gnn_forward.1} parent=1 // pred_check
      _
    $region43: #{ssh_gnn_forward.1} parent=1 // pred_check_branch
      %46 = sbr.rel (0) target = $region45
    $region44: #{ssh_gnn_forward.1} parent=1 // pred_region
      _
    $region45: #{ssh_gnn_forward.1} parent=1 // pred_fallthru
      _
    // Predicated region
    $region46: #{ssh_gnn_forward.1} parent=1 // pred_check
      _
    $region47: #{ssh_gnn_forward.1} parent=1 // pred_check_branch
      %48 = sbr.rel (0) target = $region49
    $region48: #{ssh_gnn_forward.1} parent=1 // pred_region
      _
    $region49: #{ssh_gnn_forward.1} parent=1 // pred_fallthru
      _
    // Predicated region
    $region50: #{ssh_gnn_forward.1} parent=1 // pred_check
      _
    $region51: #{ssh_gnn_forward.1} parent=1 // pred_check_branch
      %50 = sbr.rel (0) target = $region53
    $region52: #{ssh_gnn_forward.1} parent=1 // pred_region
      _
    $region53: #{ssh_gnn_forward.1} parent=1 // pred_fallthru
      _
    // Predicated region
    $region54: #{ssh_gnn_forward.1} parent=1 // pred_check
      _
    $region55: #{ssh_gnn_forward.1} parent=1 // pred_check_branch
      %52 = sbr.rel (0) target = $region57
    $region56: #{ssh_gnn_forward.1} parent=1 // pred_region
      _
    $region57: #{ssh_gnn_forward.1} parent=1 // pred_fallthru
      _
    // Predicated region
    $region58: #{ssh_gnn_forward.1} parent=1 // pred_check
      _
    $region59: #{ssh_gnn_forward.1} parent=1 // pred_check_branch
      %54 = sbr.rel (0) target = $region61
    $region60: #{ssh_gnn_forward.1} parent=1 // pred_region
      _
    $region61: #{ssh_gnn_forward.1} parent=1 // pred_fallthru
      _
    // Predicated region
    $region62: #{ssh_gnn_forward.1} parent=1 // pred_check
      _
    $region63: #{ssh_gnn_forward.1} parent=1 // pred_check_branch
      %56 = sbr.rel (0) target = $region65
    $region64: #{ssh_gnn_forward.1} parent=1 // pred_region
      _
    $region65: #{ssh_gnn_forward.1} parent=1 // pred_fallthru
      _
    // Predicated region
    $region66: #{ssh_gnn_forward.1} parent=1 // pred_check
      _
    $region67: #{ssh_gnn_forward.1} parent=1 // pred_check_branch
      %58 = sbr.rel (0) target = $region69
    $region68: #{ssh_gnn_forward.1} parent=1 // pred_region
      _
    $region69: #{ssh_gnn_forward.1} parent=1 // pred_fallthru
      _
    %v59 = vld [vmem:[%s2] sm:$0xff]
    %v60 = vld [vmem:[%s2 + $0x8] sm:$0xff]
    %v61 = vld [vmem:[%s2 + $0x10] sm:$0xff]
    %v62 = vld [vmem:[%s2 + $0x18] sm:$0xff]
    %v63 = vld [vmem:[%s2 + $0x20] sm:$0xff]
    %v64 = vld [vmem:[%s2 + $0x28] sm:$0xff]
    %v65 = vld [vmem:[%s2 + $0x30] sm:$0xff]
    %v66 = vld [vmem:[%s2 + $0x38] sm:$0xff]
    %v67 = vld [vmem:[%s2 + $0x40] sm:$0xff]
    %v68 = vld [vmem:[%s2 + $0x48] sm:$0xff]
    %v69 = vld [vmem:[%s2 + $0x50] sm:$0xff]
    %v70 = vld [vmem:[%s2 + $0x58] sm:$0xff]
    %v71 = vld [vmem:[%s2 + $0x60] sm:$0xff]
    %v72 = vld [vmem:[%s2 + $0x68] sm:$0xff]
    %v73 = vld [vmem:[%s2 + $0x70] sm:$0xff]
    %v74 = vld [vmem:[%s2 + $0x78] sm:$0xff]
    %v75 = vld [vmem:[%s7] sm:$0x7f]
    %v76 = vld [vmem:[%s3] sm:$0xff]
    %v77 = vld [vmem:[%s3 + $0x8] sm:$0xff]
    %v78 = vld [vmem:[%s3 + $0x10] sm:$0xff]
    %v79 = vld [vmem:[%s3 + $0x18] sm:$0xff]
    %v80 = vld [vmem:[%s3 + $0x20] sm:$0xff]
    %v81 = vld [vmem:[%s3 + $0x28] sm:$0xff]
    %v82 = vld [vmem:[%s3 + $0x30] sm:$0xff]
    %v83 = vld [vmem:[%s3 + $0x38] sm:$0xff]
    %v84 = vld [vmem:[%s3 + $0x40] sm:$0xff]
    %v85 = vld [vmem:[%s3 + $0x48] sm:$0xff]
    %v86 = vld [vmem:[%s3 + $0x50] sm:$0xff]
    %v87 = vld [vmem:[%s3 + $0x58] sm:$0xff]
    %v88 = vld [vmem:[%s3 + $0x60] sm:$0xff]
    %v89 = vld [vmem:[%s3 + $0x68] sm:$0xff]
    %v90 = vld [vmem:[%s3 + $0x70] sm:$0xff]
    %v91 = vld [vmem:[%s3 + $0x78] sm:$0xff]
    %v92 = vld [vmem:[%s8] sm:$0x1f]
    %vm93 = vcmask 39936
    %v95 = vsel %vm93, %v76, 0
    %v98 = vsel %vm93, %v77, 0
    %v101 = vsel %vm93, %v78, 0
    %v104 = vsel %vm93, %v79, 0
    %v107 = vsel %vm93, %v80, 0
    %v110 = vsel %vm93, %v81, 0
    %v113 = vsel %vm93, %v82, 0
    %v116 = vsel %vm93, %v83, 0
    %v119 = vsel %vm93, %v84, 0
    %v122 = vsel %vm93, %v85, 0
    %v125 = vsel %vm93, %v86, 0
    %v128 = vsel %vm93, %v87, 0
    %v131 = vsel %vm93, %v88, 0
    %v134 = vsel %vm93, %v89, 0
    %v137 = vsel %vm93, %v90, 0
    %v140 = vsel %vm93, %v91, 0
    %vm142 = vcmask 1044480
    %v144 = vsel %vm142, %v92, 0
    %146 = vmatprep.subr.mxu0 0.0
    %147 = vmatpush1.msra.mxu0 0.0
    %148 = vmatprep.subr.mxu0 0.0
    %149 = vmatpush1.msra.mxu0 0.0
    %150 = vmatprep.subr.mxu0 0.0
    %151 = vmatpush1.msra.mxu0 0.0
    %152 = vmatprep.subr.mxu0 0.0
    %153 = vmatpush1.msra.mxu0 0.0
    %154 = vmatprep.subr.mxu0 0.0
    %155 = vmatpush1.msra.mxu0 0.0
    %156 = vmatprep.subr.mxu0 0.0
    %157 = vmatpush1.msra.mxu0 0.0
    %158 = vmatprep.subr.mxu0 0.0
    %159 = vmatpush1.msra.mxu0 0.0
    %160 = vmatprep.subr.mxu0 0.0
    %161 = vmatpush1.msra.mxu0 0.0
    %162 = vmatprep.subr.mxu0 0.0
    %163 = vmatpush1.msra.mxu0 0.0
    %164 = vmatprep.subr.mxu0 0.0
    %165 = vmatpush1.msra.mxu0 0.0
    %166 = vmatprep.subr.mxu0 0.0
    %167 = vmatpush1.msra.mxu0 0.0
    %168 = vmatprep.subr.mxu0 0.0
    %169 = vmatpush1.msra.mxu0 0.0
    %170 = vmatprep.subr.mxu0 0.0
    %171 = vmatpush1.msra.mxu0 0.0
    %172 = vmatprep.subr.mxu0 0.0
    %173 = vmatpush1.msra.mxu0 0.0
    %174 = vmatprep.subr.mxu0 0.0
    %175 = vmatpush1.msra.mxu0 0.0
    %176 = vmatprep.subr.mxu0 0.0
    %177 = vmatpush1.msra.mxu0 %v144
    %178 = vmatprep.subr.mxu0 0.0
    %179 = vmatpush2.msra.mxu0 0.0
    %180 = vmatprep.subr.mxu0 0.0
    %181 = vmatpush2.msra.mxu0 0.0
    %182 = vmatprep.subr.mxu0 0.0
    %183 = vmatpush2.msra.mxu0 0.0
    %184 = vmatprep.subr.mxu0 0.0
    %185 = vmatpush2.msra.mxu0 0.0
    %186 = vmatprep.subr.mxu0 0.0
    %187 = vmatpush2.msra.mxu0 0.0
    %188 = vmatprep.subr.mxu0 0.0
    %189 = vmatpush2.msra.mxu0 0.0
    %190 = vmatprep.subr.mxu0 0.0
    %191 = vmatpush2.msra.mxu0 0.0
    %192 = vmatprep.subr.mxu0 0.0
    %193 = vmatpush2.msra.mxu0 0.0
    %194 = vmatprep.subr.mxu0 0.0
    %195 = vmatpush2.msra.mxu0 0.0
    %196 = vmatprep.subr.mxu0 0.0
    %197 = vmatpush2.msra.mxu0 0.0
    %198 = vmatprep.subr.mxu0 0.0
    %199 = vmatpush2.msra.mxu0 0.0
    %200 = vmatprep.subr.mxu0 0.0
    %201 = vmatpush2.msra.mxu0 0.0
    %202 = vmatprep.subr.mxu0 0.0
    %203 = vmatpush2.msra.mxu0 0.0
    %204 = vmatprep.subr.mxu0 0.0
    %205 = vmatpush2.msra.mxu0 0.0
    %206 = vmatprep.subr.mxu0 0.0
    %207 = vmatpush2.msra.mxu0 0.0
    %208 = vmatprep.subr.mxu0 0.0
    %209 = vmatpush2.msra.mxu0 0.0
    %210 = vmatprep.mubr.f32.mxu0 0.0
    %211 = vmatmul.mubr.f32.gmra.mxu0 %v95
    %v212 = vpop.f32.mrf.mxu0
    %v213 = vadd.f32 0.0, %v212
    %v214 = vpop.f32.mrf.mxu0
    %215 = vmatprep.mubr.f32.mxu0 0.0
    %216 = vmatmul.mubr.f32.gmra.mxu0 %v98
    %v217 = vpop.f32.mrf.mxu0
    %v218 = vadd.f32 0.0, %v217
    %v219 = vpop.f32.mrf.mxu0
    %220 = vmatprep.mubr.f32.mxu0 0.0
    %221 = vmatmul.mubr.f32.gmra.mxu0 %v101
    %v222 = vpop.f32.mrf.mxu0
    %v223 = vadd.f32 0.0, %v222
    %v224 = vpop.f32.mrf.mxu0
    %225 = vmatprep.mubr.f32.mxu0 0.0
    %226 = vmatmul.mubr.f32.gmra.mxu0 %v104
    %v227 = vpop.f32.mrf.mxu0
    %v228 = vadd.f32 0.0, %v227
    %v229 = vpop.f32.mrf.mxu0
    %230 = vmatprep.mubr.f32.mxu0 0.0
    %231 = vmatmul.mubr.f32.gmra.mxu0 %v107
    %v232 = vpop.f32.mrf.mxu0
    %v233 = vadd.f32 0.0, %v232
    %v234 = vpop.f32.mrf.mxu0
    %235 = vmatprep.mubr.f32.mxu0 0.0
    %236 = vmatmul.mubr.f32.gmra.mxu0 %v110
    %v237 = vpop.f32.mrf.mxu0
    %v238 = vadd.f32 0.0, %v237
    %v239 = vpop.f32.mrf.mxu0
    %240 = vmatprep.mubr.f32.mxu0 0.0
    %241 = vmatmul.mubr.f32.gmra.mxu0 %v113
    %v242 = vpop.f32.mrf.mxu0
    %v243 = vadd.f32 0.0, %v242
    %v244 = vpop.f32.mrf.mxu0
    %245 = vmatprep.mubr.f32.mxu0 0.0
    %246 = vmatmul.mubr.f32.gmra.mxu0 %v116
    %v247 = vpop.f32.mrf.mxu0
    %v248 = vadd.f32 0.0, %v247
    %v249 = vpop.f32.mrf.mxu0
    %250 = vmatprep.mubr.f32.mxu0 0.0
    %251 = vmatmul.mubr.f32.gmra.mxu0 %v119
    %v252 = vpop.f32.mrf.mxu0
    %v253 = vadd.f32 0.0, %v252
    %v254 = vpop.f32.mrf.mxu0
    %255 = vmatprep.mubr.f32.mxu0 0.0
    %256 = vmatmul.mubr.f32.gmra.mxu0 %v122
    %v257 = vpop.f32.mrf.mxu0
    %v258 = vadd.f32 0.0, %v257
    %v259 = vpop.f32.mrf.mxu0
    %260 = vmatprep.mubr.f32.mxu0 0.0
    %261 = vmatmul.mubr.f32.gmra.mxu0 %v125
    %v262 = vpop.f32.mrf.mxu0
    %v263 = vadd.f32 0.0, %v262
    %v264 = vpop.f32.mrf.mxu0
    %265 = vmatprep.mubr.f32.mxu0 0.0
    %266 = vmatmul.mubr.f32.gmra.mxu0 %v128
    %v267 = vpop.f32.mrf.mxu0
    %v268 = vadd.f32 0.0, %v267
    %v269 = vpop.f32.mrf.mxu0
    %270 = vmatprep.mubr.f32.mxu0 0.0
    %271 = vmatmul.mubr.f32.gmra.mxu0 %v131
    %v272 = vpop.f32.mrf.mxu0
    %v273 = vadd.f32 0.0, %v272
    %v274 = vpop.f32.mrf.mxu0
    %275 = vmatprep.mubr.f32.mxu0 0.0
    %276 = vmatmul.mubr.f32.gmra.mxu0 %v134
    %v277 = vpop.f32.mrf.mxu0
    %v278 = vadd.f32 0.0, %v277
    %v279 = vpop.f32.mrf.mxu0
    %280 = vmatprep.mubr.f32.mxu0 0.0
    %281 = vmatmul.mubr.f32.gmra.mxu0 %v137
    %v282 = vpop.f32.mrf.mxu0
    %v283 = vadd.f32 0.0, %v282
    %v284 = vpop.f32.mrf.mxu0
    %285 = vmatprep.mubr.f32.mxu0 0.0
    %286 = vmatmul.mubr.f32.gmra.mxu0 %v140
    %v287 = vpop.f32.mrf.mxu0
    %v288 = vadd.f32 0.0, %v287
    %v289 = vpop.f32.mrf.mxu0
    %290 = vdwg.mxu0
    %vm291 = vcmask 56320
    %v293 = vsel %vm291, %v59, 0
    %v296 = vsel %vm291, %v60, 0
    %v299 = vsel %vm291, %v61, 0
    %v302 = vsel %vm291, %v62, 0
    %v305 = vsel %vm291, %v63, 0
    %v308 = vsel %vm291, %v64, 0
    %v311 = vsel %vm291, %v65, 0
    %v314 = vsel %vm291, %v66, 0
    %v317 = vsel %vm291, %v67, 0
    %v320 = vsel %vm291, %v68, 0
    %v323 = vsel %vm291, %v69, 0
    %v326 = vsel %vm291, %v70, 0
    %v329 = vsel %vm291, %v71, 0
    %v332 = vsel %vm291, %v72, 0
    %v335 = vsel %vm291, %v73, 0
    %v338 = vsel %vm291, %v74, 0
    %vm340 = vcmask 1046528
    %v342 = vsel %vm340, %v75, 0
    %344 = vmatprep.subr.mxu0 0.0
    %345 = vmatpush1.msra.mxu0 0.0
    %346 = vmatprep.subr.mxu0 0.0
    %347 = vmatpush1.msra.mxu0 0.0
    %348 = vmatprep.subr.mxu0 0.0
    %349 = vmatpush1.msra.mxu0 0.0
    %350 = vmatprep.subr.mxu0 0.0
    %351 = vmatpush1.msra.mxu0 0.0
    %352 = vmatprep.subr.mxu0 0.0
    %353 = vmatpush1.msra.mxu0 0.0
    %354 = vmatprep.subr.mxu0 0.0
    %355 = vmatpush1.msra.mxu0 0.0
    %356 = vmatprep.subr.mxu0 0.0
    %357 = vmatpush1.msra.mxu0 0.0
    %358 = vmatprep.subr.mxu0 0.0
    %359 = vmatpush1.msra.mxu0 0.0
    %360 = vmatprep.subr.mxu0 0.0
    %361 = vmatpush1.msra.mxu0 0.0
    %362 = vmatprep.subr.mxu0 0.0
    %363 = vmatpush1.msra.mxu0 0.0
    %364 = vmatprep.subr.mxu0 0.0
    %365 = vmatpush1.msra.mxu0 0.0
    %366 = vmatprep.subr.mxu0 0.0
    %367 = vmatpush1.msra.mxu0 0.0
    %368 = vmatprep.subr.mxu0 0.0
    %369 = vmatpush1.msra.mxu0 0.0
    %370 = vmatprep.subr.mxu0 0.0
    %371 = vmatpush1.msra.mxu0 0.0
    %372 = vmatprep.subr.mxu0 0.0
    %373 = vmatpush1.msra.mxu0 0.0
    %374 = vmatprep.subr.mxu0 0.0
    %375 = vmatpush1.msra.mxu0 %v342
    %376 = vmatprep.subr.mxu0 0.0
    %377 = vmatpush2.msra.mxu0 0.0
    %378 = vmatprep.subr.mxu0 0.0
    %379 = vmatpush2.msra.mxu0 0.0
    %380 = vmatprep.subr.mxu0 0.0
    %381 = vmatpush2.msra.mxu0 0.0
    %382 = vmatprep.subr.mxu0 0.0
    %383 = vmatpush2.msra.mxu0 0.0
    %384 = vmatprep.subr.mxu0 0.0
    %385 = vmatpush2.msra.mxu0 0.0
    %386 = vmatprep.subr.mxu0 0.0
    %387 = vmatpush2.msra.mxu0 0.0
    %388 = vmatprep.subr.mxu0 0.0
    %389 = vmatpush2.msra.mxu0 0.0
    %390 = vmatprep.subr.mxu0 0.0
    %391 = vmatpush2.msra.mxu0 0.0
    %392 = vmatprep.subr.mxu0 0.0
    %393 = vmatpush2.msra.mxu0 0.0
    %394 = vmatprep.subr.mxu0 0.0
    %395 = vmatpush2.msra.mxu0 0.0
    %396 = vmatprep.subr.mxu0 0.0
    %397 = vmatpush2.msra.mxu0 0.0
    %398 = vmatprep.subr.mxu0 0.0
    %399 = vmatpush2.msra.mxu0 0.0
    %400 = vmatprep.subr.mxu0 0.0
    %401 = vmatpush2.msra.mxu0 0.0
    %402 = vmatprep.subr.mxu0 0.0
    %403 = vmatpush2.msra.mxu0 0.0
    %404 = vmatprep.subr.mxu0 0.0
    %405 = vmatpush2.msra.mxu0 0.0
    %406 = vmatprep.subr.mxu0 0.0
    %407 = vmatpush2.msra.mxu0 0.0
    %408 = vmatprep.mubr.f32.mxu0 0.0
    %409 = vmatmul.mubr.f32.gmra.mxu0 %v293
    %v410 = vpop.f32.mrf.mxu0
    %v411 = vadd.f32 %v213, %v410
    %v412 = vpop.f32.mrf.mxu0
    %413 = vmatprep.mubr.f32.mxu0 0.0
    %414 = vmatmul.mubr.f32.gmra.mxu0 %v296
    %v415 = vpop.f32.mrf.mxu0
    %v416 = vadd.f32 %v218, %v415
    %v417 = vpop.f32.mrf.mxu0
    %418 = vmatprep.mubr.f32.mxu0 0.0
    %419 = vmatmul.mubr.f32.gmra.mxu0 %v299
    %v420 = vpop.f32.mrf.mxu0
    %v421 = vadd.f32 %v223, %v420
    %v422 = vpop.f32.mrf.mxu0
    %423 = vmatprep.mubr.f32.mxu0 0.0
    %424 = vmatmul.mubr.f32.gmra.mxu0 %v302
    %v425 = vpop.f32.mrf.mxu0
    %v426 = vadd.f32 %v228, %v425
    %v427 = vpop.f32.mrf.mxu0
    %428 = vmatprep.mubr.f32.mxu0 0.0
    %429 = vmatmul.mubr.f32.gmra.mxu0 %v305
    %v430 = vpop.f32.mrf.mxu0
    %v431 = vadd.f32 %v233, %v430
    %v432 = vpop.f32.mrf.mxu0
    %433 = vmatprep.mubr.f32.mxu0 0.0
    %434 = vmatmul.mubr.f32.gmra.mxu0 %v308
    %v435 = vpop.f32.mrf.mxu0
    %v436 = vadd.f32 %v238, %v435
    %v437 = vpop.f32.mrf.mxu0
    %438 = vmatprep.mubr.f32.mxu0 0.0
    %439 = vmatmul.mubr.f32.gmra.mxu0 %v311
    %v440 = vpop.f32.mrf.mxu0
    %v441 = vadd.f32 %v243, %v440
    %v442 = vpop.f32.mrf.mxu0
    %443 = vmatprep.mubr.f32.mxu0 0.0
    %444 = vmatmul.mubr.f32.gmra.mxu0 %v314
    %v445 = vpop.f32.mrf.mxu0
    %v446 = vadd.f32 %v248, %v445
    %v447 = vpop.f32.mrf.mxu0
    %448 = vmatprep.mubr.f32.mxu0 0.0
    %449 = vmatmul.mubr.f32.gmra.mxu0 %v317
    %v450 = vpop.f32.mrf.mxu0
    %v451 = vadd.f32 %v253, %v450
    %v452 = vpop.f32.mrf.mxu0
    %453 = vmatprep.mubr.f32.mxu0 0.0
    %454 = vmatmul.mubr.f32.gmra.mxu0 %v320
    %v455 = vpop.f32.mrf.mxu0
    %v456 = vadd.f32 %v258, %v455
    %v457 = vpop.f32.mrf.mxu0
    %458 = vmatprep.mubr.f32.mxu0 0.0
    %459 = vmatmul.mubr.f32.gmra.mxu0 %v323
    %v460 = vpop.f32.mrf.mxu0
    %v461 = vadd.f32 %v263, %v460
    %v462 = vpop.f32.mrf.mxu0
    %463 = vmatprep.mubr.f32.mxu0 0.0
    %464 = vmatmul.mubr.f32.gmra.mxu0 %v326
    %v465 = vpop.f32.mrf.mxu0
    %v466 = vadd.f32 %v268, %v465
    %v467 = vpop.f32.mrf.mxu0
    %468 = vmatprep.mubr.f32.mxu0 0.0
    %469 = vmatmul.mubr.f32.gmra.mxu0 %v329
    %v470 = vpop.f32.mrf.mxu0
    %v471 = vadd.f32 %v273, %v470
    %v472 = vpop.f32.mrf.mxu0
    %473 = vmatprep.mubr.f32.mxu0 0.0
    %474 = vmatmul.mubr.f32.gmra.mxu0 %v332
    %v475 = vpop.f32.mrf.mxu0
    %v476 = vadd.f32 %v278, %v475
    %v477 = vpop.f32.mrf.mxu0
    %478 = vmatprep.mubr.f32.mxu0 0.0
    %479 = vmatmul.mubr.f32.gmra.mxu0 %v335
    %v480 = vpop.f32.mrf.mxu0
    %v481 = vadd.f32 %v283, %v480
    %v482 = vpop.f32.mrf.mxu0
    %483 = vmatprep.mubr.f32.mxu0 0.0
    %484 = vmatmul.mubr.f32.gmra.mxu0 %v338
    %v485 = vpop.f32.mrf.mxu0
    %v486 = vadd.f32 %v288, %v485
    %v487 = vpop.f32.mrf.mxu0
    %488 = vdwg.mxu0
    %v489 = vld [vmem:[%s4] sm:$0xff]
    %v490 = vld [vmem:[%s4 + $0x8] sm:$0xff]
    %v491 = vld [vmem:[%s4 + $0x10] sm:$0xff]
    %v492 = vld [vmem:[%s4 + $0x18] sm:$0xff]
    %v493 = vld [vmem:[%s4 + $0x20] sm:$0xff]
    %v494 = vld [vmem:[%s4 + $0x28] sm:$0xff]
    %v495 = vld [vmem:[%s4 + $0x30] sm:$0xff]
    %v496 = vld [vmem:[%s4 + $0x38] sm:$0xff]
    %v497 = vld [vmem:[%s4 + $0x40] sm:$0xff]
    %v498 = vld [vmem:[%s4 + $0x48] sm:$0xff]
    %v499 = vld [vmem:[%s4 + $0x50] sm:$0xff]
    %v500 = vld [vmem:[%s4 + $0x58] sm:$0xff]
    %v501 = vld [vmem:[%s4 + $0x60] sm:$0xff]
    %v502 = vld [vmem:[%s4 + $0x68] sm:$0xff]
    %v503 = vld [vmem:[%s4 + $0x70] sm:$0xff]
    %v504 = vld [vmem:[%s4 + $0x78] sm:$0xff]
    %v505 = vld [vmem:[%s9] sm:$0x3f]
    %vm506 = vcmask 48128
    %v508 = vsel %vm506, %v489, 0
    %v511 = vsel %vm506, %v490, 0
    %v514 = vsel %vm506, %v491, 0
    %v517 = vsel %vm506, %v492, 0
    %v520 = vsel %vm506, %v493, 0
    %v523 = vsel %vm506, %v494, 0
    %v526 = vsel %vm506, %v495, 0
    %v529 = vsel %vm506, %v496, 0
    %v532 = vsel %vm506, %v497, 0
    %v535 = vsel %vm506, %v498, 0
    %v538 = vsel %vm506, %v499, 0
    %v541 = vsel %vm506, %v500, 0
    %v544 = vsel %vm506, %v501, 0
    %v547 = vsel %vm506, %v502, 0
    %v550 = vsel %vm506, %v503, 0
    %v553 = vsel %vm506, %v504, 0
    %vm555 = vcmask 1045504
    %v557 = vsel %vm555, %v505, 0
    %559 = vmatprep.subr.mxu0 0.0
    %560 = vmatpush1.msra.mxu0 0.0
    %561 = vmatprep.subr.mxu0 0.0
    %562 = vmatpush1.msra.mxu0 0.0
    %563 = vmatprep.subr.mxu0 0.0
    %564 = vmatpush1.msra.mxu0 0.0
    %565 = vmatprep.subr.mxu0 0.0
    %566 = vmatpush1.msra.mxu0 0.0
    %567 = vmatprep.subr.mxu0 0.0
    %568 = vmatpush1.msra.mxu0 0.0
    %569 = vmatprep.subr.mxu0 0.0
    %570 = vmatpush1.msra.mxu0 0.0
    %571 = vmatprep.subr.mxu0 0.0
    %572 = vmatpush1.msra.mxu0 0.0
    %573 = vmatprep.subr.mxu0 0.0
    %574 = vmatpush1.msra.mxu0 0.0
    %575 = vmatprep.subr.mxu0 0.0
    %576 = vmatpush1.msra.mxu0 0.0
    %577 = vmatprep.subr.mxu0 0.0
    %578 = vmatpush1.msra.mxu0 0.0
    %579 = vmatprep.subr.mxu0 0.0
    %580 = vmatpush1.msra.mxu0 0.0
    %581 = vmatprep.subr.mxu0 0.0
    %582 = vmatpush1.msra.mxu0 0.0
    %583 = vmatprep.subr.mxu0 0.0
    %584 = vmatpush1.msra.mxu0 0.0
    %585 = vmatprep.subr.mxu0 0.0
    %586 = vmatpush1.msra.mxu0 0.0
    %587 = vmatprep.subr.mxu0 0.0
    %588 = vmatpush1.msra.mxu0 0.0
    %589 = vmatprep.subr.mxu0 0.0
    %590 = vmatpush1.msra.mxu0 %v557
    %591 = vmatprep.subr.mxu0 0.0
    %592 = vmatpush2.msra.mxu0 0.0
    %593 = vmatprep.subr.mxu0 0.0
    %594 = vmatpush2.msra.mxu0 0.0
    %595 = vmatprep.subr.mxu0 0.0
    %596 = vmatpush2.msra.mxu0 0.0
    %597 = vmatprep.subr.mxu0 0.0
    %598 = vmatpush2.msra.mxu0 0.0
    %599 = vmatprep.subr.mxu0 0.0
    %600 = vmatpush2.msra.mxu0 0.0
    %601 = vmatprep.subr.mxu0 0.0
    %602 = vmatpush2.msra.mxu0 0.0
    %603 = vmatprep.subr.mxu0 0.0
    %604 = vmatpush2.msra.mxu0 0.0
    %605 = vmatprep.subr.mxu0 0.0
    %606 = vmatpush2.msra.mxu0 0.0
    %607 = vmatprep.subr.mxu0 0.0
    %608 = vmatpush2.msra.mxu0 0.0
    %609 = vmatprep.subr.mxu0 0.0
    %610 = vmatpush2.msra.mxu0 0.0
    %611 = vmatprep.subr.mxu0 0.0
    %612 = vmatpush2.msra.mxu0 0.0
    %613 = vmatprep.subr.mxu0 0.0
    %614 = vmatpush2.msra.mxu0 0.0
    %615 = vmatprep.subr.mxu0 0.0
    %616 = vmatpush2.msra.mxu0 0.0
    %617 = vmatprep.subr.mxu0 0.0
    %618 = vmatpush2.msra.mxu0 0.0
    %619 = vmatprep.subr.mxu0 0.0
    %620 = vmatpush2.msra.mxu0 0.0
    %621 = vmatprep.subr.mxu0 0.0
    %622 = vmatpush2.msra.mxu0 0.0
    %623 = vmatprep.mubr.f32.mxu0 0.0
    %624 = vmatmul.mubr.f32.gmra.mxu0 %v508
    %v625 = vpop.f32.mrf.mxu0
    %v626 = vadd.f32 0.0, %v625
    %v627 = vpop.f32.mrf.mxu0
    %628 = vmatprep.mubr.f32.mxu0 0.0
    %629 = vmatmul.mubr.f32.gmra.mxu0 %v511
    %v630 = vpop.f32.mrf.mxu0
    %v631 = vadd.f32 0.0, %v630
    %v632 = vpop.f32.mrf.mxu0
    %633 = vmatprep.mubr.f32.mxu0 0.0
    %634 = vmatmul.mubr.f32.gmra.mxu0 %v514
    %v635 = vpop.f32.mrf.mxu0
    %v636 = vadd.f32 0.0, %v635
    %v637 = vpop.f32.mrf.mxu0
    %638 = vmatprep.mubr.f32.mxu0 0.0
    %639 = vmatmul.mubr.f32.gmra.mxu0 %v517
    %v640 = vpop.f32.mrf.mxu0
    %v641 = vadd.f32 0.0, %v640
    %v642 = vpop.f32.mrf.mxu0
    %643 = vmatprep.mubr.f32.mxu0 0.0
    %644 = vmatmul.mubr.f32.gmra.mxu0 %v520
    %v645 = vpop.f32.mrf.mxu0
    %v646 = vadd.f32 0.0, %v645
    %v647 = vpop.f32.mrf.mxu0
    %648 = vmatprep.mubr.f32.mxu0 0.0
    %649 = vmatmul.mubr.f32.gmra.mxu0 %v523
    %v650 = vpop.f32.mrf.mxu0
    %v651 = vadd.f32 0.0, %v650
    %v652 = vpop.f32.mrf.mxu0
    %653 = vmatprep.mubr.f32.mxu0 0.0
    %654 = vmatmul.mubr.f32.gmra.mxu0 %v526
    %v655 = vpop.f32.mrf.mxu0
    %v656 = vadd.f32 0.0, %v655
    %v657 = vpop.f32.mrf.mxu0
    %658 = vmatprep.mubr.f32.mxu0 0.0
    %659 = vmatmul.mubr.f32.gmra.mxu0 %v529
    %v660 = vpop.f32.mrf.mxu0
    %v661 = vadd.f32 0.0, %v660
    %v662 = vpop.f32.mrf.mxu0
    %663 = vmatprep.mubr.f32.mxu0 0.0
    %664 = vmatmul.mubr.f32.gmra.mxu0 %v532
    %v665 = vpop.f32.mrf.mxu0
    %v666 = vadd.f32 0.0, %v665
    %v667 = vpop.f32.mrf.mxu0
    %668 = vmatprep.mubr.f32.mxu0 0.0
    %669 = vmatmul.mubr.f32.gmra.mxu0 %v535
    %v670 = vpop.f32.mrf.mxu0
    %v671 = vadd.f32 0.0, %v670
    %v672 = vpop.f32.mrf.mxu0
    %673 = vmatprep.mubr.f32.mxu0 0.0
    %674 = vmatmul.mubr.f32.gmra.mxu0 %v538
    %v675 = vpop.f32.mrf.mxu0
    %v676 = vadd.f32 0.0, %v675
    %v677 = vpop.f32.mrf.mxu0
    %678 = vmatprep.mubr.f32.mxu0 0.0
    %679 = vmatmul.mubr.f32.gmra.mxu0 %v541
    %v680 = vpop.f32.mrf.mxu0
    %v681 = vadd.f32 0.0, %v680
    %v682 = vpop.f32.mrf.mxu0
    %683 = vmatprep.mubr.f32.mxu0 0.0
    %684 = vmatmul.mubr.f32.gmra.mxu0 %v544
    %v685 = vpop.f32.mrf.mxu0
    %v686 = vadd.f32 0.0, %v685
    %v687 = vpop.f32.mrf.mxu0
    %688 = vmatprep.mubr.f32.mxu0 0.0
    %689 = vmatmul.mubr.f32.gmra.mxu0 %v547
    %v690 = vpop.f32.mrf.mxu0
    %v691 = vadd.f32 0.0, %v690
    %v692 = vpop.f32.mrf.mxu0
    %693 = vmatprep.mubr.f32.mxu0 0.0
    %694 = vmatmul.mubr.f32.gmra.mxu0 %v550
    %v695 = vpop.f32.mrf.mxu0
    %v696 = vadd.f32 0.0, %v695
    %v697 = vpop.f32.mrf.mxu0
    %698 = vmatprep.mubr.f32.mxu0 0.0
    %699 = vmatmul.mubr.f32.gmra.mxu0 %v553
    %v700 = vpop.f32.mrf.mxu0
    %v701 = vadd.f32 0.0, %v700
    %v702 = vpop.f32.mrf.mxu0
    %703 = vdwg.mxu0
    %v704 = vadd.f32 %v411, %v626
    %v705 = vadd.f32 %v416, %v631
    %v706 = vadd.f32 %v421, %v636
    %v707 = vadd.f32 %v426, %v641
    %v708 = vadd.f32 %v431, %v646
    %v709 = vadd.f32 %v436, %v651
    %v710 = vadd.f32 %v441, %v656
    %v711 = vadd.f32 %v446, %v661
    %v712 = vadd.f32 %v451, %v666
    %v713 = vadd.f32 %v456, %v671
    %v714 = vadd.f32 %v461, %v676
    %v715 = vadd.f32 %v466, %v681
    %v716 = vadd.f32 %v471, %v686
    %v717 = vadd.f32 %v476, %v691
    %v718 = vadd.f32 %v481, %v696
    %v719 = vadd.f32 %v486, %v701
    %v720 = vld [vmem:[%s10] sm:$0x1]
    %v722 = vlaneseq
    %v723 = vshrl.u32 %v722, 7
    %v724 = vsub.s32 0, %v723
    %v725 = vrot.slane %v720, %v724
    %v727 = vadd.f32 %v704, %v725
    %v728 = vadd.f32 %v705, %v725
    %v729 = vadd.f32 %v706, %v725
    %v730 = vadd.f32 %v707, %v725
    %v731 = vadd.f32 %v708, %v725
    %v732 = vadd.f32 %v709, %v725
    %v733 = vadd.f32 %v710, %v725
    %v734 = vadd.f32 %v711, %v725
    %v735 = vadd.f32 %v712, %v725
    %v736 = vadd.f32 %v713, %v725
    %v737 = vadd.f32 %v714, %v725
    %v738 = vadd.f32 %v715, %v725
    %v739 = vadd.f32 %v716, %v725
    %v740 = vadd.f32 %v717, %v725
    %v741 = vadd.f32 %v718, %v725
    %v742 = vadd.f32 %v719, %v725
    %vm743 = vcmp.gt.f32.partialorder %v727, 0.0
    %vm744 = vcmp.gt.f32.partialorder %v728, 0.0
    %vm745 = vcmp.gt.f32.partialorder %v729, 0.0
    %vm746 = vcmp.gt.f32.partialorder %v730, 0.0
    %vm747 = vcmp.gt.f32.partialorder %v731, 0.0
    %vm748 = vcmp.gt.f32.partialorder %v732, 0.0
    %vm749 = vcmp.gt.f32.partialorder %v733, 0.0
    %vm750 = vcmp.gt.f32.partialorder %v734, 0.0
    %vm751 = vcmp.gt.f32.partialorder %v735, 0.0
    %vm752 = vcmp.gt.f32.partialorder %v736, 0.0
    %vm753 = vcmp.gt.f32.partialorder %v737, 0.0
    %vm754 = vcmp.gt.f32.partialorder %v738, 0.0
    %vm755 = vcmp.gt.f32.partialorder %v739, 0.0
    %vm756 = vcmp.gt.f32.partialorder %v740, 0.0
    %vm757 = vcmp.gt.f32.partialorder %v741, 0.0
    %vm758 = vcmp.gt.f32.partialorder %v742, 0.0
    %v759 = vmul.f32 %v727, 0.2
    %v760 = vmul.f32 %v728, 0.2
    %v761 = vmul.f32 %v729, 0.2
    %v762 = vmul.f32 %v730, 0.2
    %v763 = vmul.f32 %v731, 0.2
    %v764 = vmul.f32 %v732, 0.2
    %v765 = vmul.f32 %v733, 0.2
    %v766 = vmul.f32 %v734, 0.2
    %v767 = vmul.f32 %v735, 0.2
    %v768 = vmul.f32 %v736, 0.2
    %v769 = vmul.f32 %v737, 0.2
    %v770 = vmul.f32 %v738, 0.2
    %v771 = vmul.f32 %v739, 0.2
    %v772 = vmul.f32 %v740, 0.2
    %v773 = vmul.f32 %v741, 0.2
    %v774 = vmul.f32 %v742, 0.2
    %v775 = vsel %vm743, %v727, %v759
    %v776 = vsel %vm744, %v728, %v760
    %v777 = vsel %vm745, %v729, %v761
    %v778 = vsel %vm746, %v730, %v762
    %v779 = vsel %vm747, %v731, %v763
    %v780 = vsel %vm748, %v732, %v764
    %v781 = vsel %vm749, %v733, %v765
    %v782 = vsel %vm750, %v734, %v766
    %v783 = vsel %vm751, %v735, %v767
    %v784 = vsel %vm752, %v736, %v768
    %v785 = vsel %vm753, %v737, %v769
    %v786 = vsel %vm754, %v738, %v770
    %v787 = vsel %vm755, %v739, %v771
    %v788 = vsel %vm756, %v740, %v772
    %v789 = vsel %vm757, %v741, %v773
    %v790 = vsel %vm758, %v742, %v774
    %v791 = vld [vmem:[%s0] sm:$0xff]
    %v792 = vld [vmem:[%s0 + $0x8] sm:$0xff]
    %v793 = vld [vmem:[%s0 + $0x10] sm:$0xff]
    %v794 = vld [vmem:[%s0 + $0x18] sm:$0xff]
    %v795 = vld [vmem:[%s0 + $0x20] sm:$0xff]
    %v796 = vld [vmem:[%s0 + $0x28] sm:$0xff]
    %v797 = vld [vmem:[%s0 + $0x30] sm:$0xff]
    %v798 = vld [vmem:[%s0 + $0x38] sm:$0xff]
    %v799 = vld [vmem:[%s0 + $0x40] sm:$0xff]
    %v800 = vld [vmem:[%s0 + $0x48] sm:$0xff]
    %v801 = vld [vmem:[%s0 + $0x50] sm:$0xff]
    %v802 = vld [vmem:[%s0 + $0x58] sm:$0xff]
    %v803 = vld [vmem:[%s0 + $0x60] sm:$0xff]
    %v804 = vld [vmem:[%s0 + $0x68] sm:$0xff]
    %v805 = vld [vmem:[%s0 + $0x70] sm:$0xff]
    %v806 = vld [vmem:[%s0 + $0x78] sm:$0xff]
    %807 = vmatprep.subr.mxu0 0.0
    %808 = vmatpush1.msra.mxu0 %v790
    %809 = vmatprep.subr.mxu0 0.0
    %810 = vmatpush1.msra.mxu0 %v789
    %811 = vmatprep.subr.mxu0 0.0
    %812 = vmatpush1.msra.mxu0 %v788
    %813 = vmatprep.subr.mxu0 0.0
    %814 = vmatpush1.msra.mxu0 %v787
    %815 = vmatprep.subr.mxu0 0.0
    %816 = vmatpush1.msra.mxu0 %v786
    %817 = vmatprep.subr.mxu0 0.0
    %818 = vmatpush1.msra.mxu0 %v785
    %819 = vmatprep.subr.mxu0 0.0
    %820 = vmatpush1.msra.mxu0 %v784
    %821 = vmatprep.subr.mxu0 0.0
    %822 = vmatpush1.msra.mxu0 %v783
    %823 = vmatprep.subr.mxu0 0.0
    %824 = vmatpush1.msra.mxu0 %v782
    %825 = vmatprep.subr.mxu0 0.0
    %826 = vmatpush1.msra.mxu0 %v781
    %827 = vmatprep.subr.mxu0 0.0
    %828 = vmatpush1.msra.mxu0 %v780
    %829 = vmatprep.subr.mxu0 0.0
    %830 = vmatpush1.msra.mxu0 %v779
    %831 = vmatprep.subr.mxu0 0.0
    %832 = vmatpush1.msra.mxu0 %v778
    %833 = vmatprep.subr.mxu0 0.0
    %834 = vmatpush1.msra.mxu0 %v777
    %835 = vmatprep.subr.mxu0 0.0
    %836 = vmatpush1.msra.mxu0 %v776
    %837 = vmatprep.subr.mxu0 0.0
    %838 = vmatpush1.msra.mxu0 %v775
    %839 = vmatprep.subr.mxu0 0.0
    %840 = vmatpush2.msra.mxu0 0.0
    %841 = vmatprep.subr.mxu0 0.0
    %842 = vmatpush2.msra.mxu0 0.0
    %843 = vmatprep.subr.mxu0 0.0
    %844 = vmatpush2.msra.mxu0 0.0
    %845 = vmatprep.subr.mxu0 0.0
    %846 = vmatpush2.msra.mxu0 0.0
    %847 = vmatprep.subr.mxu0 0.0
    %848 = vmatpush2.msra.mxu0 0.0
    %849 = vmatprep.subr.mxu0 0.0
    %850 = vmatpush2.msra.mxu0 0.0
    %851 = vmatprep.subr.mxu0 0.0
    %852 = vmatpush2.msra.mxu0 0.0
    %853 = vmatprep.subr.mxu0 0.0
    %854 = vmatpush2.msra.mxu0 0.0
    %855 = vmatprep.subr.mxu0 0.0
    %856 = vmatpush2.msra.mxu0 0.0
    %857 = vmatprep.subr.mxu0 0.0
    %858 = vmatpush2.msra.mxu0 0.0
    %859 = vmatprep.subr.mxu0 0.0
    %860 = vmatpush2.msra.mxu0 0.0
    %861 = vmatprep.subr.mxu0 0.0
    %862 = vmatpush2.msra.mxu0 0.0
    %863 = vmatprep.subr.mxu0 0.0
    %864 = vmatpush2.msra.mxu0 0.0
    %865 = vmatprep.subr.mxu0 0.0
    %866 = vmatpush2.msra.mxu0 0.0
    %867 = vmatprep.subr.mxu0 0.0
    %868 = vmatpush2.msra.mxu0 0.0
    %869 = vmatprep.subr.mxu0 0.0
    %870 = vmatpush2.msra.mxu0 0.0
    %871 = vmatprep.mubr.f32.mxu0 0.0
    %872 = vmatmul.mubr.f32.gmra.mxu0 %v791
    %v873 = vpop.f32.mrf.mxu0
    %v874 = vadd.f32 0.0, %v873
    %v875 = vpop.f32.mrf.mxu0
    %876 = vmatprep.mubr.f32.mxu0 0.0
    %877 = vmatmul.mubr.f32.gmra.mxu0 %v792
    %v878 = vpop.f32.mrf.mxu0
    %v879 = vadd.f32 0.0, %v878
    %v880 = vpop.f32.mrf.mxu0
    %881 = vmatprep.mubr.f32.mxu0 0.0
    %882 = vmatmul.mubr.f32.gmra.mxu0 %v793
    %v883 = vpop.f32.mrf.mxu0
    %v884 = vadd.f32 0.0, %v883
    %v885 = vpop.f32.mrf.mxu0
    %886 = vmatprep.mubr.f32.mxu0 0.0
    %887 = vmatmul.mubr.f32.gmra.mxu0 %v794
    %v888 = vpop.f32.mrf.mxu0
    %v889 = vadd.f32 0.0, %v888
    %v890 = vpop.f32.mrf.mxu0
    %891 = vmatprep.mubr.f32.mxu0 0.0
    %892 = vmatmul.mubr.f32.gmra.mxu0 %v795
    %v893 = vpop.f32.mrf.mxu0
    %v894 = vadd.f32 0.0, %v893
    %v895 = vpop.f32.mrf.mxu0
    %896 = vmatprep.mubr.f32.mxu0 0.0
    %897 = vmatmul.mubr.f32.gmra.mxu0 %v796
    %v898 = vpop.f32.mrf.mxu0
    %v899 = vadd.f32 0.0, %v898
    %v900 = vpop.f32.mrf.mxu0
    %901 = vmatprep.mubr.f32.mxu0 0.0
    %902 = vmatmul.mubr.f32.gmra.mxu0 %v797
    %v903 = vpop.f32.mrf.mxu0
    %v904 = vadd.f32 0.0, %v903
    %v905 = vpop.f32.mrf.mxu0
    %906 = vmatprep.mubr.f32.mxu0 0.0
    %907 = vmatmul.mubr.f32.gmra.mxu0 %v798
    %v908 = vpop.f32.mrf.mxu0
    %v909 = vadd.f32 0.0, %v908
    %v910 = vpop.f32.mrf.mxu0
    %911 = vmatprep.mubr.f32.mxu0 0.0
    %912 = vmatmul.mubr.f32.gmra.mxu0 %v799
    %v913 = vpop.f32.mrf.mxu0
    %v914 = vadd.f32 0.0, %v913
    %v915 = vpop.f32.mrf.mxu0
    %916 = vmatprep.mubr.f32.mxu0 0.0
    %917 = vmatmul.mubr.f32.gmra.mxu0 %v800
    %v918 = vpop.f32.mrf.mxu0
    %v919 = vadd.f32 0.0, %v918
    %v920 = vpop.f32.mrf.mxu0
    %921 = vmatprep.mubr.f32.mxu0 0.0
    %922 = vmatmul.mubr.f32.gmra.mxu0 %v801
    %v923 = vpop.f32.mrf.mxu0
    %v924 = vadd.f32 0.0, %v923
    %v925 = vpop.f32.mrf.mxu0
    %926 = vmatprep.mubr.f32.mxu0 0.0
    %927 = vmatmul.mubr.f32.gmra.mxu0 %v802
    %v928 = vpop.f32.mrf.mxu0
    %v929 = vadd.f32 0.0, %v928
    %v930 = vpop.f32.mrf.mxu0
    %931 = vmatprep.mubr.f32.mxu0 0.0
    %932 = vmatmul.mubr.f32.gmra.mxu0 %v803
    %v933 = vpop.f32.mrf.mxu0
    %v934 = vadd.f32 0.0, %v933
    %v935 = vpop.f32.mrf.mxu0
    %936 = vmatprep.mubr.f32.mxu0 0.0
    %937 = vmatmul.mubr.f32.gmra.mxu0 %v804
    %v938 = vpop.f32.mrf.mxu0
    %v939 = vadd.f32 0.0, %v938
    %v940 = vpop.f32.mrf.mxu0
    %941 = vmatprep.mubr.f32.mxu0 0.0
    %942 = vmatmul.mubr.f32.gmra.mxu0 %v805
    %v943 = vpop.f32.mrf.mxu0
    %v944 = vadd.f32 0.0, %v943
    %v945 = vpop.f32.mrf.mxu0
    %946 = vmatprep.mubr.f32.mxu0 0.0
    %947 = vmatmul.mubr.f32.gmra.mxu0 %v806
    %v948 = vpop.f32.mrf.mxu0
    %v949 = vadd.f32 0.0, %v948
    %v950 = vpop.f32.mrf.mxu0
    %951 = vdwg.mxu0
    %v952 = vsub.f32 %v874, %v775
    %v953 = vsub.f32 %v879, %v776
    %v954 = vsub.f32 %v884, %v777
    %v955 = vsub.f32 %v889, %v778
    %v956 = vsub.f32 %v894, %v779
    %v957 = vsub.f32 %v899, %v780
    %v958 = vsub.f32 %v904, %v781
    %v959 = vsub.f32 %v909, %v782
    %v960 = vsub.f32 %v914, %v783
    %v961 = vsub.f32 %v919, %v784
    %v962 = vsub.f32 %v924, %v785
    %v963 = vsub.f32 %v929, %v786
    %v964 = vsub.f32 %v934, %v787
    %v965 = vsub.f32 %v939, %v788
    %v966 = vsub.f32 %v944, %v789
    %v967 = vsub.f32 %v949, %v790
    %v968 = vmul.f32 %v952, %v952
    %v969 = vmul.f32 %v953, %v953
    %v970 = vmul.f32 %v954, %v954
    %v971 = vmul.f32 %v955, %v955
    %v972 = vmul.f32 %v956, %v956
    %v973 = vmul.f32 %v957, %v957
    %v974 = vmul.f32 %v958, %v958
    %v975 = vmul.f32 %v959, %v959
    %v976 = vmul.f32 %v960, %v960
    %v977 = vmul.f32 %v961, %v961
    %v978 = vmul.f32 %v962, %v962
    %v979 = vmul.f32 %v963, %v963
    %v980 = vmul.f32 %v964, %v964
    %v981 = vmul.f32 %v965, %v965
    %v982 = vmul.f32 %v966, %v966
    %v983 = vmul.f32 %v967, %v967
    %vm984 = vcmask 261120
    %v985 = vsel %vm984, %v968, 0.0
    %v986 = vsel %vm984, %v969, 0.0
    %v987 = vadd.f32 %v985, %v986
    %v988 = vsel %vm984, %v970, 0.0
    %v989 = vadd.f32 %v987, %v988
    %v990 = vsel %vm984, %v971, 0.0
    %v991 = vadd.f32 %v989, %v990
    %v992 = vsel %vm984, %v972, 0.0
    %v993 = vadd.f32 %v991, %v992
    %v994 = vsel %vm984, %v973, 0.0
    %v995 = vadd.f32 %v993, %v994
    %v996 = vsel %vm984, %v974, 0.0
    %v997 = vadd.f32 %v995, %v996
    %v998 = vsel %vm984, %v975, 0.0
    %v999 = vadd.f32 %v997, %v998
    %v1000 = vsel %vm984, %v976, 0.0
    %v1001 = vadd.f32 %v999, %v1000
    %v1002 = vsel %vm984, %v977, 0.0
    %v1003 = vadd.f32 %v1001, %v1002
    %v1004 = vsel %vm984, %v978, 0.0
    %v1005 = vadd.f32 %v1003, %v1004
    %v1006 = vsel %vm984, %v979, 0.0
    %v1007 = vadd.f32 %v1005, %v1006
    %v1008 = vsel %vm984, %v980, 0.0
    %v1009 = vadd.f32 %v1007, %v1008
    %v1010 = vsel %vm984, %v981, 0.0
    %v1011 = vadd.f32 %v1009, %v1010
    %v1012 = vsel %vm984, %v982, 0.0
    %v1013 = vadd.f32 %v1011, %v1012
    %v1014 = vsel %vm984, %v983, 0.0
    %v1015 = vadd.f32 %v1013, %v1014
    %1016 = vadd.xlane.f32.xlu0 %v1015
    %v1017 = vpop.xlane.xlu0 %1016
    %v1018 = vrot.slane %v1017, 4
    %v1019 = vadd.f32 %v1017, %v1018
    %v1020 = vrot.slane %v1019, 2
    %v1021 = vadd.f32 %v1019, %v1020
    %v1022 = vrot.slane %v1021, 1
    %v1023 = vadd.f32 %v1021, %v1022
    %s1024 = vtos %v1023
    %v1025 = vstv %s1024
    %v1026 = vmul.f32 %v1025, 0.00024414063
    %v1027 = vmul.f32 %v775, %v775
    %v1028 = vmul.f32 %v776, %v776
    %v1029 = vmul.f32 %v777, %v777
    %v1030 = vmul.f32 %v778, %v778
    %v1031 = vmul.f32 %v779, %v779
    %v1032 = vmul.f32 %v780, %v780
    %v1033 = vmul.f32 %v781, %v781
    %v1034 = vmul.f32 %v782, %v782
    %v1035 = vmul.f32 %v783, %v783
    %v1036 = vmul.f32 %v784, %v784
    %v1037 = vmul.f32 %v785, %v785
    %v1038 = vmul.f32 %v786, %v786
    %v1039 = vmul.f32 %v787, %v787
    %v1040 = vmul.f32 %v788, %v788
    %v1041 = vmul.f32 %v789, %v789
    %v1042 = vmul.f32 %v790, %v790
    %v1043 = vsel %vm984, %v1027, 0.0
    %v1044 = vsel %vm984, %v1028, 0.0
    %v1045 = vadd.f32 %v1043, %v1044
    %v1046 = vsel %vm984, %v1029, 0.0
    %v1047 = vadd.f32 %v1045, %v1046
    %v1048 = vsel %vm984, %v1030, 0.0
    %v1049 = vadd.f32 %v1047, %v1048
    %v1050 = vsel %vm984, %v1031, 0.0
    %v1051 = vadd.f32 %v1049, %v1050
    %v1052 = vsel %vm984, %v1032, 0.0
    %v1053 = vadd.f32 %v1051, %v1052
    %v1054 = vsel %vm984, %v1033, 0.0
    %v1055 = vadd.f32 %v1053, %v1054
    %v1056 = vsel %vm984, %v1034, 0.0
    %v1057 = vadd.f32 %v1055, %v1056
    %v1058 = vsel %vm984, %v1035, 0.0
    %v1059 = vadd.f32 %v1057, %v1058
    %v1060 = vsel %vm984, %v1036, 0.0
    %v1061 = vadd.f32 %v1059, %v1060
    %v1062 = vsel %vm984, %v1037, 0.0
    %v1063 = vadd.f32 %v1061, %v1062
    %v1064 = vsel %vm984, %v1038, 0.0
    %v1065 = vadd.f32 %v1063, %v1064
    %v1066 = vsel %vm984, %v1039, 0.0
    %v1067 = vadd.f32 %v1065, %v1066
    %v1068 = vsel %vm984, %v1040, 0.0
    %v1069 = vadd.f32 %v1067, %v1068
    %v1070 = vsel %vm984, %v1041, 0.0
    %v1071 = vadd.f32 %v1069, %v1070
    %v1072 = vsel %vm984, %v1042, 0.0
    %v1073 = vadd.f32 %v1071, %v1072
    %1074 = vadd.xlane.f32.xlu0 %v1073
    %v1075 = vpop.xlane.xlu0 %1074
    %v1076 = vrot.slane %v1075, 4
    %v1077 = vadd.f32 %v1075, %v1076
    %v1078 = vrot.slane %v1077, 2
    %v1079 = vadd.f32 %v1077, %v1078
    %v1080 = vrot.slane %v1079, 1
    %v1081 = vadd.f32 %v1079, %v1080
    %s1082 = vtos %v1081
    %v1083 = vstv %s1082
    %v1084 = vmul.f32 %v1083, 0.00024414063
    %v1085 = vadd.f32 %v1026, %v1084
    %vm1086 = vcmask 0
    %1087 = vst.msk [vmem:[#allocation2] sm:$0x1] %vm1086, %v1085
    %v1088 = vld [vmem:[%s1] sm:$0xff]
    %v1089 = vld [vmem:[%s1 + $0x8] sm:$0xff]
    %v1090 = vld [vmem:[%s1 + $0x10] sm:$0xff]
    %v1091 = vld [vmem:[%s1 + $0x18] sm:$0xff]
    %v1093 = vsel %vm984, %v1088, 0
    %v1096 = vsel %vm984, %v1089, 0
    %v1099 = vsel %vm984, %v1090, 0
    %v1102 = vsel %vm984, %v1091, 0
    %1104 = vmatprep.subr.mxu0 0.0
    %1105 = vmatpush1.msra.mxu0 0.0
    %1106 = vmatprep.subr.mxu0 0.0
    %1107 = vmatpush1.msra.mxu0 0.0
    %1108 = vmatprep.subr.mxu0 0.0
    %1109 = vmatpush1.msra.mxu0 0.0
    %1110 = vmatprep.subr.mxu0 0.0
    %1111 = vmatpush1.msra.mxu0 0.0
    %1112 = vmatprep.subr.mxu0 0.0
    %1113 = vmatpush1.msra.mxu0 0.0
    %1114 = vmatprep.subr.mxu0 0.0
    %1115 = vmatpush1.msra.mxu0 0.0
    %1116 = vmatprep.subr.mxu0 0.0
    %1117 = vmatpush1.msra.mxu0 0.0
    %1118 = vmatprep.subr.mxu0 0.0
    %1119 = vmatpush1.msra.mxu0 0.0
    %1120 = vmatprep.subr.mxu0 0.0
    %1121 = vmatpush1.msra.mxu0 0.0
    %1122 = vmatprep.subr.mxu0 0.0
    %1123 = vmatpush1.msra.mxu0 0.0
    %1124 = vmatprep.subr.mxu0 0.0
    %1125 = vmatpush1.msra.mxu0 0.0
    %1126 = vmatprep.subr.mxu0 0.0
    %1127 = vmatpush1.msra.mxu0 0.0
    %1128 = vmatprep.subr.mxu0 0.0
    %1129 = vmatpush1.msra.mxu0 %v790
    %1130 = vmatprep.subr.mxu0 0.0
    %1131 = vmatpush1.msra.mxu0 %v789
    %1132 = vmatprep.subr.mxu0 0.0
    %1133 = vmatpush1.msra.mxu0 %v788
    %1134 = vmatprep.subr.mxu0 0.0
    %1135 = vmatpush1.msra.mxu0 %v787
    %1136 = vmatprep.subr.mxu0 0.0
    %1137 = vmatpush2.msra.mxu0 0.0
    %1138 = vmatprep.subr.mxu0 0.0
    %1139 = vmatpush2.msra.mxu0 0.0
    %1140 = vmatprep.subr.mxu0 0.0
    %1141 = vmatpush2.msra.mxu0 0.0
    %1142 = vmatprep.subr.mxu0 0.0
    %1143 = vmatpush2.msra.mxu0 0.0
    %1144 = vmatprep.subr.mxu0 0.0
    %1145 = vmatpush2.msra.mxu0 0.0
    %1146 = vmatprep.subr.mxu0 0.0
    %1147 = vmatpush2.msra.mxu0 0.0
    %1148 = vmatprep.subr.mxu0 0.0
    %1149 = vmatpush2.msra.mxu0 0.0
    %1150 = vmatprep.subr.mxu0 0.0
    %1151 = vmatpush2.msra.mxu0 0.0
    %1152 = vmatprep.subr.mxu0 0.0
    %1153 = vmatpush2.msra.mxu0 0.0
    %1154 = vmatprep.subr.mxu0 0.0
    %1155 = vmatpush2.msra.mxu0 0.0
    %1156 = vmatprep.subr.mxu0 0.0
    %1157 = vmatpush2.msra.mxu0 0.0
    %1158 = vmatprep.subr.mxu0 0.0
    %1159 = vmatpush2.msra.mxu0 0.0
    %1160 = vmatprep.subr.mxu0 0.0
    %1161 = vmatpush2.msra.mxu0 0.0
    %1162 = vmatprep.subr.mxu0 0.0
    %1163 = vmatpush2.msra.mxu0 0.0
    %1164 = vmatprep.subr.mxu0 0.0
    %1165 = vmatpush2.msra.mxu0 0.0
    %1166 = vmatprep.subr.mxu0 0.0
    %1167 = vmatpush2.msra.mxu0 0.0
    %1168 = vmatprep.mubr.f32.mxu0 0.0
    %1169 = vmatmul.mubr.f32.gmra.mxu0 %v1093
    %v1170 = vpop.f32.mrf.mxu0
    %v1171 = vadd.f32 0.0, %v1170
    %v1172 = vpop.f32.mrf.mxu0
    %1173 = vmatprep.mubr.f32.mxu0 0.0
    %1174 = vmatmul.mubr.f32.gmra.mxu0 %v1096
    %v1175 = vpop.f32.mrf.mxu0
    %v1176 = vadd.f32 0.0, %v1175
    %v1177 = vpop.f32.mrf.mxu0
    %1178 = vmatprep.mubr.f32.mxu0 0.0
    %1179 = vmatmul.mubr.f32.gmra.mxu0 %v1099
    %v1180 = vpop.f32.mrf.mxu0
    %v1181 = vadd.f32 0.0, %v1180
    %v1182 = vpop.f32.mrf.mxu0
    %1183 = vmatprep.mubr.f32.mxu0 0.0
    %1184 = vmatmul.mubr.f32.gmra.mxu0 %v1102
    %v1185 = vpop.f32.mrf.mxu0
    %v1186 = vadd.f32 0.0, %v1185
    %v1187 = vpop.f32.mrf.mxu0
    %1188 = vdwg.mxu0
    %v1189 = vld [vmem:[%s11] sm:$0xff]
    %v1190 = vld [vmem:[%s11 + $0x8] sm:$0xff]
    %v1191 = vld [vmem:[%s11 + $0x10] sm:$0xff]
    %v1192 = vld [vmem:[%s11 + $0x18] sm:$0xff]
    %v1194 = vsel %vm984, %v1171, 0
    %v1197 = vsel %vm984, %v1176, 0
    %v1200 = vsel %vm984, %v1181, 0
    %v1203 = vsel %vm984, %v1186, 0
    %1205 = vmatprep.subr.mxu0 0.0
    %1206 = vmatpush1.msra.mxu0 0.0
    %1207 = vmatprep.subr.mxu0 0.0
    %1208 = vmatpush1.msra.mxu0 0.0
    %1209 = vmatprep.subr.mxu0 0.0
    %1210 = vmatpush1.msra.mxu0 0.0
    %1211 = vmatprep.subr.mxu0 0.0
    %1212 = vmatpush1.msra.mxu0 0.0
    %1213 = vmatprep.subr.mxu0 0.0
    %1214 = vmatpush1.msra.mxu0 0.0
    %1215 = vmatprep.subr.mxu0 0.0
    %1216 = vmatpush1.msra.mxu0 0.0
    %1217 = vmatprep.subr.mxu0 0.0
    %1218 = vmatpush1.msra.mxu0 0.0
    %1219 = vmatprep.subr.mxu0 0.0
    %1220 = vmatpush1.msra.mxu0 0.0
    %1221 = vmatprep.subr.mxu0 0.0
    %1222 = vmatpush1.msra.mxu0 0.0
    %1223 = vmatprep.subr.mxu0 0.0
    %1224 = vmatpush1.msra.mxu0 0.0
    %1225 = vmatprep.subr.mxu0 0.0
    %1226 = vmatpush1.msra.mxu0 0.0
    %1227 = vmatprep.subr.mxu0 0.0
    %1228 = vmatpush1.msra.mxu0 0.0
    %1229 = vmatprep.subr.mxu0 0.0
    %1230 = vmatpush1.msra.mxu0 %v1192
    %1231 = vmatprep.subr.mxu0 0.0
    %1232 = vmatpush1.msra.mxu0 %v1191
    %1233 = vmatprep.subr.mxu0 0.0
    %1234 = vmatpush1.msra.mxu0 %v1190
    %1235 = vmatprep.subr.mxu0 0.0
    %1236 = vmatpush1.msra.mxu0 %v1189
    %1237 = vmatprep.subr.mxu0 0.0
    %1238 = vmatpush2.msra.mxu0 0.0
    %1239 = vmatprep.subr.mxu0 0.0
    %1240 = vmatpush2.msra.mxu0 0.0
    %1241 = vmatprep.subr.mxu0 0.0
    %1242 = vmatpush2.msra.mxu0 0.0
    %1243 = vmatprep.subr.mxu0 0.0
    %1244 = vmatpush2.msra.mxu0 0.0
    %1245 = vmatprep.subr.mxu0 0.0
    %1246 = vmatpush2.msra.mxu0 0.0
    %1247 = vmatprep.subr.mxu0 0.0
    %1248 = vmatpush2.msra.mxu0 0.0
    %1249 = vmatprep.subr.mxu0 0.0
    %1250 = vmatpush2.msra.mxu0 0.0
    %1251 = vmatprep.subr.mxu0 0.0
    %1252 = vmatpush2.msra.mxu0 0.0
    %1253 = vmatprep.subr.mxu0 0.0
    %1254 = vmatpush2.msra.mxu0 0.0
    %1255 = vmatprep.subr.mxu0 0.0
    %1256 = vmatpush2.msra.mxu0 0.0
    %1257 = vmatprep.subr.mxu0 0.0
    %1258 = vmatpush2.msra.mxu0 0.0
    %1259 = vmatprep.subr.mxu0 0.0
    %1260 = vmatpush2.msra.mxu0 0.0
    %1261 = vmatprep.subr.mxu0 0.0
    %1262 = vmatpush2.msra.mxu0 0.0
    %1263 = vmatprep.subr.mxu0 0.0
    %1264 = vmatpush2.msra.mxu0 0.0
    %1265 = vmatprep.subr.mxu0 0.0
    %1266 = vmatpush2.msra.mxu0 0.0
    %1267 = vmatprep.subr.mxu0 0.0
    %1268 = vmatpush2.msra.mxu0 0.0
    %1269 = vmatprep.mubr.f32.mxu0 0.0
    %1270 = vmatmul.mubr.f32.gmra.mxu0 %v1194
    %v1271 = vpop.f32.mrf.mxu0
    %v1272 = vadd.f32 0.0, %v1271
    %v1273 = vpop.f32.mrf.mxu0
    %1274 = vmatprep.mubr.f32.mxu0 0.0
    %1275 = vmatmul.mubr.f32.gmra.mxu0 %v1197
    %v1276 = vpop.f32.mrf.mxu0
    %v1277 = vadd.f32 0.0, %v1276
    %v1278 = vpop.f32.mrf.mxu0
    %1279 = vmatprep.mubr.f32.mxu0 0.0
    %1280 = vmatmul.mubr.f32.gmra.mxu0 %v1200
    %v1281 = vpop.f32.mrf.mxu0
    %v1282 = vadd.f32 0.0, %v1281
    %v1283 = vpop.f32.mrf.mxu0
    %1284 = vmatprep.mubr.f32.mxu0 0.0
    %1285 = vmatmul.mubr.f32.gmra.mxu0 %v1203
    %v1286 = vpop.f32.mrf.mxu0
    %v1287 = vadd.f32 0.0, %v1286
    %v1288 = vpop.f32.mrf.mxu0
    %1289 = vdwg.mxu0
    %v1290 = vld [vmem:[%s5] sm:$0xff]
    %v1291 = vld [vmem:[%s5 + $0x8] sm:$0xff]
    %v1292 = vld [vmem:[%s5 + $0x10] sm:$0xff]
    %v1293 = vld [vmem:[%s5 + $0x18] sm:$0xff]
    %v1294 = vld [vmem:[%s5 + $0x20] sm:$0xff]
    %v1295 = vld [vmem:[%s5 + $0x28] sm:$0xff]
    %v1296 = vld [vmem:[%s5 + $0x30] sm:$0xff]
    %v1297 = vld [vmem:[%s5 + $0x38] sm:$0xff]
    %v1298 = vld [vmem:[%s5 + $0x40] sm:$0xff]
    %v1299 = vld [vmem:[%s5 + $0x48] sm:$0xff]
    %v1300 = vld [vmem:[%s5 + $0x50] sm:$0xff]
    %v1301 = vld [vmem:[%s5 + $0x58] sm:$0xff]
    %v1302 = vld [vmem:[%s5 + $0x60] sm:$0xff]
    %v1303 = vld [vmem:[%s5 + $0x68] sm:$0xff]
    %v1304 = vld [vmem:[%s5 + $0x70] sm:$0xff]
    %v1305 = vld [vmem:[%s5 + $0x78] sm:$0xff]
    %v1306 = vld [vmem:[%s12] sm:$0x1f]
    %v1307 = vld [vmem:[%s6] sm:$0xff]
    %v1308 = vld [vmem:[%s6 + $0x8] sm:$0xff]
    %v1309 = vld [vmem:[%s6 + $0x10] sm:$0xff]
    %v1310 = vld [vmem:[%s6 + $0x18] sm:$0xff]
    %v1311 = vld [vmem:[%s6 + $0x20] sm:$0xff]
    %v1312 = vld [vmem:[%s6 + $0x28] sm:$0xff]
    %v1313 = vld [vmem:[%s6 + $0x30] sm:$0xff]
    %v1314 = vld [vmem:[%s6 + $0x38] sm:$0xff]
    %v1315 = vld [vmem:[%s6 + $0x40] sm:$0xff]
    %v1316 = vld [vmem:[%s6 + $0x48] sm:$0xff]
    %v1317 = vld [vmem:[%s6 + $0x50] sm:$0xff]
    %v1318 = vld [vmem:[%s6 + $0x58] sm:$0xff]
    %v1319 = vld [vmem:[%s6 + $0x60] sm:$0xff]
    %v1320 = vld [vmem:[%s6 + $0x68] sm:$0xff]
    %v1321 = vld [vmem:[%s6 + $0x70] sm:$0xff]
    %v1322 = vld [vmem:[%s6 + $0x78] sm:$0xff]
    %v1323 = vld [vmem:[%s13] sm:$0x3f]
    %v1325 = vsel %vm506, %v1307, 0
    %v1328 = vsel %vm506, %v1308, 0
    %v1331 = vsel %vm506, %v1309, 0
    %v1334 = vsel %vm506, %v1310, 0
    %v1337 = vsel %vm506, %v1311, 0
    %v1340 = vsel %vm506, %v1312, 0
    %v1343 = vsel %vm506, %v1313, 0
    %v1346 = vsel %vm506, %v1314, 0
    %v1349 = vsel %vm506, %v1315, 0
    %v1352 = vsel %vm506, %v1316, 0
    %v1355 = vsel %vm506, %v1317, 0
    %v1358 = vsel %vm506, %v1318, 0
    %v1361 = vsel %vm506, %v1319, 0
    %v1364 = vsel %vm506, %v1320, 0
    %v1367 = vsel %vm506, %v1321, 0
    %v1370 = vsel %vm506, %v1322, 0
    %v1373 = vsel %vm555, %v1323, 0
    %1375 = vmatprep.subr.mxu0 0.0
    %1376 = vmatpush1.msra.mxu0 0.0
    %1377 = vmatprep.subr.mxu0 0.0
    %1378 = vmatpush1.msra.mxu0 0.0
    %1379 = vmatprep.subr.mxu0 0.0
    %1380 = vmatpush1.msra.mxu0 0.0
    %1381 = vmatprep.subr.mxu0 0.0
    %1382 = vmatpush1.msra.mxu0 0.0
    %1383 = vmatprep.subr.mxu0 0.0
    %1384 = vmatpush1.msra.mxu0 0.0
    %1385 = vmatprep.subr.mxu0 0.0
    %1386 = vmatpush1.msra.mxu0 0.0
    %1387 = vmatprep.subr.mxu0 0.0
    %1388 = vmatpush1.msra.mxu0 0.0
    %1389 = vmatprep.subr.mxu0 0.0
    %1390 = vmatpush1.msra.mxu0 0.0
    %1391 = vmatprep.subr.mxu0 0.0
    %1392 = vmatpush1.msra.mxu0 0.0
    %1393 = vmatprep.subr.mxu0 0.0
    %1394 = vmatpush1.msra.mxu0 0.0
    %1395 = vmatprep.subr.mxu0 0.0
    %1396 = vmatpush1.msra.mxu0 0.0
    %1397 = vmatprep.subr.mxu0 0.0
    %1398 = vmatpush1.msra.mxu0 0.0
    %1399 = vmatprep.subr.mxu0 0.0
    %1400 = vmatpush1.msra.mxu0 0.0
    %1401 = vmatprep.subr.mxu0 0.0
    %1402 = vmatpush1.msra.mxu0 0.0
    %1403 = vmatprep.subr.mxu0 0.0
    %1404 = vmatpush1.msra.mxu0 0.0
    %1405 = vmatprep.subr.mxu0 0.0
    %1406 = vmatpush1.msra.mxu0 %v1373
    %1407 = vmatprep.subr.mxu0 0.0
    %1408 = vmatpush2.msra.mxu0 0.0
    %1409 = vmatprep.subr.mxu0 0.0
    %1410 = vmatpush2.msra.mxu0 0.0
    %1411 = vmatprep.subr.mxu0 0.0
    %1412 = vmatpush2.msra.mxu0 0.0
    %1413 = vmatprep.subr.mxu0 0.0
    %1414 = vmatpush2.msra.mxu0 0.0
    %1415 = vmatprep.subr.mxu0 0.0
    %1416 = vmatpush2.msra.mxu0 0.0
    %1417 = vmatprep.subr.mxu0 0.0
    %1418 = vmatpush2.msra.mxu0 0.0
    %1419 = vmatprep.subr.mxu0 0.0
    %1420 = vmatpush2.msra.mxu0 0.0
    %1421 = vmatprep.subr.mxu0 0.0
    %1422 = vmatpush2.msra.mxu0 0.0
    %1423 = vmatprep.subr.mxu0 0.0
    %1424 = vmatpush2.msra.mxu0 0.0
    %1425 = vmatprep.subr.mxu0 0.0
    %1426 = vmatpush2.msra.mxu0 0.0
    %1427 = vmatprep.subr.mxu0 0.0
    %1428 = vmatpush2.msra.mxu0 0.0
    %1429 = vmatprep.subr.mxu0 0.0
    %1430 = vmatpush2.msra.mxu0 0.0
    %1431 = vmatprep.subr.mxu0 0.0
    %1432 = vmatpush2.msra.mxu0 0.0
    %1433 = vmatprep.subr.mxu0 0.0
    %1434 = vmatpush2.msra.mxu0 0.0
    %1435 = vmatprep.subr.mxu0 0.0
    %1436 = vmatpush2.msra.mxu0 0.0
    %1437 = vmatprep.subr.mxu0 0.0
    %1438 = vmatpush2.msra.mxu0 0.0
    %1439 = vmatprep.mubr.f32.mxu0 0.0
    %1440 = vmatmul.mubr.f32.gmra.mxu0 %v1325
    %v1441 = vpop.f32.mrf.mxu0
    %v1442 = vadd.f32 0.0, %v1441
    %v1443 = vpop.f32.mrf.mxu0
    %1444 = vmatprep.mubr.f32.mxu0 0.0
    %1445 = vmatmul.mubr.f32.gmra.mxu0 %v1328
    %v1446 = vpop.f32.mrf.mxu0
    %v1447 = vadd.f32 0.0, %v1446
    %v1448 = vpop.f32.mrf.mxu0
    %1449 = vmatprep.mubr.f32.mxu0 0.0
    %1450 = vmatmul.mubr.f32.gmra.mxu0 %v1331
    %v1451 = vpop.f32.mrf.mxu0
    %v1452 = vadd.f32 0.0, %v1451
    %v1453 = vpop.f32.mrf.mxu0
    %1454 = vmatprep.mubr.f32.mxu0 0.0
    %1455 = vmatmul.mubr.f32.gmra.mxu0 %v1334
    %v1456 = vpop.f32.mrf.mxu0
    %v1457 = vadd.f32 0.0, %v1456
    %v1458 = vpop.f32.mrf.mxu0
    %1459 = vmatprep.mubr.f32.mxu0 0.0
    %1460 = vmatmul.mubr.f32.gmra.mxu0 %v1337
    %v1461 = vpop.f32.mrf.mxu0
    %v1462 = vadd.f32 0.0, %v1461
    %v1463 = vpop.f32.mrf.mxu0
    %1464 = vmatprep.mubr.f32.mxu0 0.0
    %1465 = vmatmul.mubr.f32.gmra.mxu0 %v1340
    %v1466 = vpop.f32.mrf.mxu0
    %v1467 = vadd.f32 0.0, %v1466
    %v1468 = vpop.f32.mrf.mxu0
    %1469 = vmatprep.mubr.f32.mxu0 0.0
    %1470 = vmatmul.mubr.f32.gmra.mxu0 %v1343
    %v1471 = vpop.f32.mrf.mxu0
    %v1472 = vadd.f32 0.0, %v1471
    %v1473 = vpop.f32.mrf.mxu0
    %1474 = vmatprep.mubr.f32.mxu0 0.0
    %1475 = vmatmul.mubr.f32.gmra.mxu0 %v1346
    %v1476 = vpop.f32.mrf.mxu0
    %v1477 = vadd.f32 0.0, %v1476
    %v1478 = vpop.f32.mrf.mxu0
    %1479 = vmatprep.mubr.f32.mxu0 0.0
    %1480 = vmatmul.mubr.f32.gmra.mxu0 %v1349
    %v1481 = vpop.f32.mrf.mxu0
    %v1482 = vadd.f32 0.0, %v1481
    %v1483 = vpop.f32.mrf.mxu0
    %1484 = vmatprep.mubr.f32.mxu0 0.0
    %1485 = vmatmul.mubr.f32.gmra.mxu0 %v1352
    %v1486 = vpop.f32.mrf.mxu0
    %v1487 = vadd.f32 0.0, %v1486
    %v1488 = vpop.f32.mrf.mxu0
    %1489 = vmatprep.mubr.f32.mxu0 0.0
    %1490 = vmatmul.mubr.f32.gmra.mxu0 %v1355
    %v1491 = vpop.f32.mrf.mxu0
    %v1492 = vadd.f32 0.0, %v1491
    %v1493 = vpop.f32.mrf.mxu0
    %1494 = vmatprep.mubr.f32.mxu0 0.0
    %1495 = vmatmul.mubr.f32.gmra.mxu0 %v1358
    %v1496 = vpop.f32.mrf.mxu0
    %v1497 = vadd.f32 0.0, %v1496
    %v1498 = vpop.f32.mrf.mxu0
    %1499 = vmatprep.mubr.f32.mxu0 0.0
    %1500 = vmatmul.mubr.f32.gmra.mxu0 %v1361
    %v1501 = vpop.f32.mrf.mxu0
    %v1502 = vadd.f32 0.0, %v1501
    %v1503 = vpop.f32.mrf.mxu0
    %1504 = vmatprep.mubr.f32.mxu0 0.0
    %1505 = vmatmul.mubr.f32.gmra.mxu0 %v1364
    %v1506 = vpop.f32.mrf.mxu0
    %v1507 = vadd.f32 0.0, %v1506
    %v1508 = vpop.f32.mrf.mxu0
    %1509 = vmatprep.mubr.f32.mxu0 0.0
    %1510 = vmatmul.mubr.f32.gmra.mxu0 %v1367
    %v1511 = vpop.f32.mrf.mxu0
    %v1512 = vadd.f32 0.0, %v1511
    %v1513 = vpop.f32.mrf.mxu0
    %1514 = vmatprep.mubr.f32.mxu0 0.0
    %1515 = vmatmul.mubr.f32.gmra.mxu0 %v1370
    %v1516 = vpop.f32.mrf.mxu0
    %v1517 = vadd.f32 0.0, %v1516
    %v1518 = vpop.f32.mrf.mxu0
    %1519 = vdwg.mxu0
    %v1521 = vsel %vm93, %v1290, 0
    %v1524 = vsel %vm93, %v1291, 0
    %v1527 = vsel %vm93, %v1292, 0
    %v1530 = vsel %vm93, %v1293, 0
    %v1533 = vsel %vm93, %v1294, 0
    %v1536 = vsel %vm93, %v1295, 0
    %v1539 = vsel %vm93, %v1296, 0
    %v1542 = vsel %vm93, %v1297, 0
    %v1545 = vsel %vm93, %v1298, 0
    %v1548 = vsel %vm93, %v1299, 0
    %v1551 = vsel %vm93, %v1300, 0
    %v1554 = vsel %vm93, %v1301, 0
    %v1557 = vsel %vm93, %v1302, 0
    %v1560 = vsel %vm93, %v1303, 0
    %v1563 = vsel %vm93, %v1304, 0
    %v1566 = vsel %vm93, %v1305, 0
    %v1569 = vsel %vm142, %v1306, 0
    %1571 = vmatprep.subr.mxu0 0.0
    %1572 = vmatpush1.msra.mxu0 0.0
    %1573 = vmatprep.subr.mxu0 0.0
    %1574 = vmatpush1.msra.mxu0 0.0
    %1575 = vmatprep.subr.mxu0 0.0
    %1576 = vmatpush1.msra.mxu0 0.0
    %1577 = vmatprep.subr.mxu0 0.0
    %1578 = vmatpush1.msra.mxu0 0.0
    %1579 = vmatprep.subr.mxu0 0.0
    %1580 = vmatpush1.msra.mxu0 0.0
    %1581 = vmatprep.subr.mxu0 0.0
    %1582 = vmatpush1.msra.mxu0 0.0
    %1583 = vmatprep.subr.mxu0 0.0
    %1584 = vmatpush1.msra.mxu0 0.0
    %1585 = vmatprep.subr.mxu0 0.0
    %1586 = vmatpush1.msra.mxu0 0.0
    %1587 = vmatprep.subr.mxu0 0.0
    %1588 = vmatpush1.msra.mxu0 0.0
    %1589 = vmatprep.subr.mxu0 0.0
    %1590 = vmatpush1.msra.mxu0 0.0
    %1591 = vmatprep.subr.mxu0 0.0
    %1592 = vmatpush1.msra.mxu0 0.0
    %1593 = vmatprep.subr.mxu0 0.0
    %1594 = vmatpush1.msra.mxu0 0.0
    %1595 = vmatprep.subr.mxu0 0.0
    %1596 = vmatpush1.msra.mxu0 0.0
    %1597 = vmatprep.subr.mxu0 0.0
    %1598 = vmatpush1.msra.mxu0 0.0
    %1599 = vmatprep.subr.mxu0 0.0
    %1600 = vmatpush1.msra.mxu0 0.0
    %1601 = vmatprep.subr.mxu0 0.0
    %1602 = vmatpush1.msra.mxu0 %v1569
    %1603 = vmatprep.subr.mxu0 0.0
    %1604 = vmatpush2.msra.mxu0 0.0
    %1605 = vmatprep.subr.mxu0 0.0
    %1606 = vmatpush2.msra.mxu0 0.0
    %1607 = vmatprep.subr.mxu0 0.0
    %1608 = vmatpush2.msra.mxu0 0.0
    %1609 = vmatprep.subr.mxu0 0.0
    %1610 = vmatpush2.msra.mxu0 0.0
    %1611 = vmatprep.subr.mxu0 0.0
    %1612 = vmatpush2.msra.mxu0 0.0
    %1613 = vmatprep.subr.mxu0 0.0
    %1614 = vmatpush2.msra.mxu0 0.0
    %1615 = vmatprep.subr.mxu0 0.0
    %1616 = vmatpush2.msra.mxu0 0.0
    %1617 = vmatprep.subr.mxu0 0.0
    %1618 = vmatpush2.msra.mxu0 0.0
    %1619 = vmatprep.subr.mxu0 0.0
    %1620 = vmatpush2.msra.mxu0 0.0
    %1621 = vmatprep.subr.mxu0 0.0
    %1622 = vmatpush2.msra.mxu0 0.0
    %1623 = vmatprep.subr.mxu0 0.0
    %1624 = vmatpush2.msra.mxu0 0.0
    %1625 = vmatprep.subr.mxu0 0.0
    %1626 = vmatpush2.msra.mxu0 0.0
    %1627 = vmatprep.subr.mxu0 0.0
    %1628 = vmatpush2.msra.mxu0 0.0
    %1629 = vmatprep.subr.mxu0 0.0
    %1630 = vmatpush2.msra.mxu0 0.0
    %1631 = vmatprep.subr.mxu0 0.0
    %1632 = vmatpush2.msra.mxu0 0.0
    %1633 = vmatprep.subr.mxu0 0.0
    %1634 = vmatpush2.msra.mxu0 0.0
    %1635 = vmatprep.mubr.f32.mxu0 0.0
    %1636 = vmatmul.mubr.f32.gmra.mxu0 %v1521
    %v1637 = vpop.f32.mrf.mxu0
    %v1638 = vadd.f32 %v1442, %v1637
    %v1639 = vpop.f32.mrf.mxu0
    %1640 = vmatprep.mubr.f32.mxu0 0.0
    %1641 = vmatmul.mubr.f32.gmra.mxu0 %v1524
    %v1642 = vpop.f32.mrf.mxu0
    %v1643 = vadd.f32 %v1447, %v1642
    %v1644 = vpop.f32.mrf.mxu0
    %1645 = vmatprep.mubr.f32.mxu0 0.0
    %1646 = vmatmul.mubr.f32.gmra.mxu0 %v1527
    %v1647 = vpop.f32.mrf.mxu0
    %v1648 = vadd.f32 %v1452, %v1647
    %v1649 = vpop.f32.mrf.mxu0
    %1650 = vmatprep.mubr.f32.mxu0 0.0
    %1651 = vmatmul.mubr.f32.gmra.mxu0 %v1530
    %v1652 = vpop.f32.mrf.mxu0
    %v1653 = vadd.f32 %v1457, %v1652
    %v1654 = vpop.f32.mrf.mxu0
    %1655 = vmatprep.mubr.f32.mxu0 0.0
    %1656 = vmatmul.mubr.f32.gmra.mxu0 %v1533
    %v1657 = vpop.f32.mrf.mxu0
    %v1658 = vadd.f32 %v1462, %v1657
    %v1659 = vpop.f32.mrf.mxu0
    %1660 = vmatprep.mubr.f32.mxu0 0.0
    %1661 = vmatmul.mubr.f32.gmra.mxu0 %v1536
    %v1662 = vpop.f32.mrf.mxu0
    %v1663 = vadd.f32 %v1467, %v1662
    %v1664 = vpop.f32.mrf.mxu0
    %1665 = vmatprep.mubr.f32.mxu0 0.0
    %1666 = vmatmul.mubr.f32.gmra.mxu0 %v1539
    %v1667 = vpop.f32.mrf.mxu0
    %v1668 = vadd.f32 %v1472, %v1667
    %v1669 = vpop.f32.mrf.mxu0
    %1670 = vmatprep.mubr.f32.mxu0 0.0
    %1671 = vmatmul.mubr.f32.gmra.mxu0 %v1542
    %v1672 = vpop.f32.mrf.mxu0
    %v1673 = vadd.f32 %v1477, %v1672
    %v1674 = vpop.f32.mrf.mxu0
    %1675 = vmatprep.mubr.f32.mxu0 0.0
    %1676 = vmatmul.mubr.f32.gmra.mxu0 %v1545
    %v1677 = vpop.f32.mrf.mxu0
    %v1678 = vadd.f32 %v1482, %v1677
    %v1679 = vpop.f32.mrf.mxu0
    %1680 = vmatprep.mubr.f32.mxu0 0.0
    %1681 = vmatmul.mubr.f32.gmra.mxu0 %v1548
    %v1682 = vpop.f32.mrf.mxu0
    %v1683 = vadd.f32 %v1487, %v1682
    %v1684 = vpop.f32.mrf.mxu0
    %1685 = vmatprep.mubr.f32.mxu0 0.0
    %1686 = vmatmul.mubr.f32.gmra.mxu0 %v1551
    %v1687 = vpop.f32.mrf.mxu0
    %v1688 = vadd.f32 %v1492, %v1687
    %v1689 = vpop.f32.mrf.mxu0
    %1690 = vmatprep.mubr.f32.mxu0 0.0
    %1691 = vmatmul.mubr.f32.gmra.mxu0 %v1554
    %v1692 = vpop.f32.mrf.mxu0
    %v1693 = vadd.f32 %v1497, %v1692
    %v1694 = vpop.f32.mrf.mxu0
    %1695 = vmatprep.mubr.f32.mxu0 0.0
    %1696 = vmatmul.mubr.f32.gmra.mxu0 %v1557
    %v1697 = vpop.f32.mrf.mxu0
    %v1698 = vadd.f32 %v1502, %v1697
    %v1699 = vpop.f32.mrf.mxu0
    %1700 = vmatprep.mubr.f32.mxu0 0.0
    %1701 = vmatmul.mubr.f32.gmra.mxu0 %v1560
    %v1702 = vpop.f32.mrf.mxu0
    %v1703 = vadd.f32 %v1507, %v1702
    %v1704 = vpop.f32.mrf.mxu0
    %1705 = vmatprep.mubr.f32.mxu0 0.0
    %1706 = vmatmul.mubr.f32.gmra.mxu0 %v1563
    %v1707 = vpop.f32.mrf.mxu0
    %v1708 = vadd.f32 %v1512, %v1707
    %v1709 = vpop.f32.mrf.mxu0
    %1710 = vmatprep.mubr.f32.mxu0 0.0
    %1711 = vmatmul.mubr.f32.gmra.mxu0 %v1566
    %v1712 = vpop.f32.mrf.mxu0
    %v1713 = vadd.f32 %v1517, %v1712
    %v1714 = vpop.f32.mrf.mxu0
    %1715 = vdwg.mxu0
    %v1716 = vadd.f32 %v1638, %v1272
    %v1717 = vadd.f32 %v1643, %v1277
    %v1718 = vadd.f32 %v1648, %v1282
    %v1719 = vadd.f32 %v1653, %v1287
    %v1720 = vadd.f32 %v1658, %v1272
    %v1721 = vadd.f32 %v1663, %v1277
    %v1722 = vadd.f32 %v1668, %v1282
    %v1723 = vadd.f32 %v1673, %v1287
    %v1724 = vadd.f32 %v1678, %v1272
    %v1725 = vadd.f32 %v1683, %v1277
    %v1726 = vadd.f32 %v1688, %v1282
    %v1727 = vadd.f32 %v1693, %v1287
    %v1728 = vadd.f32 %v1698, %v1272
    %v1729 = vadd.f32 %v1703, %v1277
    %v1730 = vadd.f32 %v1708, %v1282
    %v1731 = vadd.f32 %v1713, %v1287
    %v1732 = vld [vmem:[%s14] sm:$0x1]
    %v1734 = vlaneseq
    %v1735 = vshrl.u32 %v1734, 7
    %v1736 = vsub.s32 0, %v1735
    %v1737 = vrot.slane %v1732, %v1736
    %v1739 = vadd.f32 %v1716, %v1737
    %v1740 = vadd.f32 %v1717, %v1737
    %v1741 = vadd.f32 %v1718, %v1737
    %v1742 = vadd.f32 %v1719, %v1737
    %v1743 = vadd.f32 %v1720, %v1737
    %v1744 = vadd.f32 %v1721, %v1737
    %v1745 = vadd.f32 %v1722, %v1737
    %v1746 = vadd.f32 %v1723, %v1737
    %v1747 = vadd.f32 %v1724, %v1737
    %v1748 = vadd.f32 %v1725, %v1737
    %v1749 = vadd.f32 %v1726, %v1737
    %v1750 = vadd.f32 %v1727, %v1737
    %v1751 = vadd.f32 %v1728, %v1737
    %v1752 = vadd.f32 %v1729, %v1737
    %v1753 = vadd.f32 %v1730, %v1737
    %v1754 = vadd.f32 %v1731, %v1737
    %vm1755 = vcmp.gt.f32.partialorder %v1739, 0.0
    %vm1756 = vcmp.gt.f32.partialorder %v1740, 0.0
    %vm1757 = vcmp.gt.f32.partialorder %v1741, 0.0
    %vm1758 = vcmp.gt.f32.partialorder %v1742, 0.0
    %vm1759 = vcmp.gt.f32.partialorder %v1743, 0.0
    %vm1760 = vcmp.gt.f32.partialorder %v1744, 0.0
    %vm1761 = vcmp.gt.f32.partialorder %v1745, 0.0
    %vm1762 = vcmp.gt.f32.partialorder %v1746, 0.0
    %vm1763 = vcmp.gt.f32.partialorder %v1747, 0.0
    %vm1764 = vcmp.gt.f32.partialorder %v1748, 0.0
    %vm1765 = vcmp.gt.f32.partialorder %v1749, 0.0
    %vm1766 = vcmp.gt.f32.partialorder %v1750, 0.0
    %vm1767 = vcmp.gt.f32.partialorder %v1751, 0.0
    %vm1768 = vcmp.gt.f32.partialorder %v1752, 0.0
    %vm1769 = vcmp.gt.f32.partialorder %v1753, 0.0
    %vm1770 = vcmp.gt.f32.partialorder %v1754, 0.0
    %v1771 = vmul.f32 %v1739, 0.2
    %v1772 = vmul.f32 %v1740, 0.2
    %v1773 = vmul.f32 %v1741, 0.2
    %v1774 = vmul.f32 %v1742, 0.2
    %v1775 = vmul.f32 %v1743, 0.2
    %v1776 = vmul.f32 %v1744, 0.2
    %v1777 = vmul.f32 %v1745, 0.2
    %v1778 = vmul.f32 %v1746, 0.2
    %v1779 = vmul.f32 %v1747, 0.2
    %v1780 = vmul.f32 %v1748, 0.2
    %v1781 = vmul.f32 %v1749, 0.2
    %v1782 = vmul.f32 %v1750, 0.2
    %v1783 = vmul.f32 %v1751, 0.2
    %v1784 = vmul.f32 %v1752, 0.2
    %v1785 = vmul.f32 %v1753, 0.2
    %v1786 = vmul.f32 %v1754, 0.2
    %v1787 = vsel %vm1755, %v1739, %v1771
    %v1788 = vsel %vm1756, %v1740, %v1772
    %v1789 = vsel %vm1757, %v1741, %v1773
    %v1790 = vsel %vm1758, %v1742, %v1774
    %v1791 = vsel %vm1759, %v1743, %v1775
    %v1792 = vsel %vm1760, %v1744, %v1776
    %v1793 = vsel %vm1761, %v1745, %v1777
    %v1794 = vsel %vm1762, %v1746, %v1778
    %v1795 = vsel %vm1763, %v1747, %v1779
    %v1796 = vsel %vm1764, %v1748, %v1780
    %v1797 = vsel %vm1765, %v1749, %v1781
    %v1798 = vsel %vm1766, %v1750, %v1782
    %v1799 = vsel %vm1767, %v1751, %v1783
    %v1800 = vsel %vm1768, %v1752, %v1784
    %v1801 = vsel %vm1769, %v1753, %v1785
    %v1802 = vsel %vm1770, %v1754, %v1786
    %v1803 = vld [vmem:[%s15] sm:$0xff]
    %v1804 = vld [vmem:[%s15 + $0x8] sm:$0xff]
    %v1805 = vld [vmem:[%s15 + $0x10] sm:$0xff]
    %v1806 = vld [vmem:[%s15 + $0x18] sm:$0xff]
    %v1807 = vld [vmem:[%s16] sm:$0x1]
    %v1809 = vlaneseq
    %v1810 = vshrl.u32 %v1809, 7
    %v1811 = vsub.s32 0, %v1810
    %v1812 = vrot.slane %v1807, %v1811
    %v1815 = vsel %vm984, %v775, 0
    %v1818 = vsel %vm984, %v776, 0
    %v1821 = vsel %vm984, %v777, 0
    %v1824 = vsel %vm984, %v778, 0
    %v1827 = vsel %vm984, %v779, 0
    %v1830 = vsel %vm984, %v780, 0
    %v1833 = vsel %vm984, %v781, 0
    %v1836 = vsel %vm984, %v782, 0
    %v1839 = vsel %vm984, %v783, 0
    %v1842 = vsel %vm984, %v784, 0
    %v1845 = vsel %vm984, %v785, 0
    %v1848 = vsel %vm984, %v786, 0
    %v1851 = vsel %vm984, %v787, 0
    %v1854 = vsel %vm984, %v788, 0
    %v1857 = vsel %vm984, %v789, 0
    %v1860 = vsel %vm984, %v790, 0
    %v1863 = vsel %vm984, %v1787, 0
    %v1866 = vsel %vm984, %v1788, 0
    %v1869 = vsel %vm984, %v1789, 0
    %v1872 = vsel %vm984, %v1790, 0
    %v1875 = vsel %vm984, %v1791, 0
    %v1878 = vsel %vm984, %v1792, 0
    %v1881 = vsel %vm984, %v1793, 0
    %v1884 = vsel %vm984, %v1794, 0
    %v1887 = vsel %vm984, %v1795, 0
    %v1890 = vsel %vm984, %v1796, 0
    %v1893 = vsel %vm984, %v1797, 0
    %v1896 = vsel %vm984, %v1798, 0
    %v1899 = vsel %vm984, %v1799, 0
    %v1902 = vsel %vm984, %v1800, 0
    %v1905 = vsel %vm984, %v1801, 0
    %v1908 = vsel %vm984, %v1802, 0
    %1910 = vmatprep.subr.mxu0 0.0
    %1911 = vmatpush1.msra.mxu0 0.0
    %1912 = vmatprep.subr.mxu0 0.0
    %1913 = vmatpush1.msra.mxu0 0.0
    %1914 = vmatprep.subr.mxu0 0.0
    %1915 = vmatpush1.msra.mxu0 0.0
    %1916 = vmatprep.subr.mxu0 0.0
    %1917 = vmatpush1.msra.mxu0 0.0
    %1918 = vmatprep.subr.mxu0 0.0
    %1919 = vmatpush1.msra.mxu0 0.0
    %1920 = vmatprep.subr.mxu0 0.0
    %1921 = vmatpush1.msra.mxu0 0.0
    %1922 = vmatprep.subr.mxu0 0.0
    %1923 = vmatpush1.msra.mxu0 0.0
    %1924 = vmatprep.subr.mxu0 0.0
    %1925 = vmatpush1.msra.mxu0 0.0
    %1926 = vmatprep.subr.mxu0 0.0
    %1927 = vmatpush1.msra.mxu0 0.0
    %1928 = vmatprep.subr.mxu0 0.0
    %1929 = vmatpush1.msra.mxu0 0.0
    %1930 = vmatprep.subr.mxu0 0.0
    %1931 = vmatpush1.msra.mxu0 0.0
    %1932 = vmatprep.subr.mxu0 0.0
    %1933 = vmatpush1.msra.mxu0 0.0
    %1934 = vmatprep.subr.mxu0 0.0
    %1935 = vmatpush1.msra.mxu0 %v1806
    %1936 = vmatprep.subr.mxu0 0.0
    %1937 = vmatpush1.msra.mxu0 %v1805
    %1938 = vmatprep.subr.mxu0 0.0
    %1939 = vmatpush1.msra.mxu0 %v1804
    %1940 = vmatprep.subr.mxu0 0.0
    %1941 = vmatpush1.msra.mxu0 %v1803
    %1942 = vmatprep.subr.mxu0 0.0
    %1943 = vmatpush2.msra.mxu0 0.0
    %1944 = vmatprep.subr.mxu0 0.0
    %1945 = vmatpush2.msra.mxu0 0.0
    %1946 = vmatprep.subr.mxu0 0.0
    %1947 = vmatpush2.msra.mxu0 0.0
    %1948 = vmatprep.subr.mxu0 0.0
    %1949 = vmatpush2.msra.mxu0 0.0
    %1950 = vmatprep.subr.mxu0 0.0
    %1951 = vmatpush2.msra.mxu0 0.0
    %1952 = vmatprep.subr.mxu0 0.0
    %1953 = vmatpush2.msra.mxu0 0.0
    %1954 = vmatprep.subr.mxu0 0.0
    %1955 = vmatpush2.msra.mxu0 0.0
    %1956 = vmatprep.subr.mxu0 0.0
    %1957 = vmatpush2.msra.mxu0 0.0
    %1958 = vmatprep.subr.mxu0 0.0
    %1959 = vmatpush2.msra.mxu0 0.0
    %1960 = vmatprep.subr.mxu0 0.0
    %1961 = vmatpush2.msra.mxu0 0.0
    %1962 = vmatprep.subr.mxu0 0.0
    %1963 = vmatpush2.msra.mxu0 0.0
    %1964 = vmatprep.subr.mxu0 0.0
    %1965 = vmatpush2.msra.mxu0 0.0
    %1966 = vmatprep.subr.mxu0 0.0
    %1967 = vmatpush2.msra.mxu0 0.0
    %1968 = vmatprep.subr.mxu0 0.0
    %1969 = vmatpush2.msra.mxu0 0.0
    %1970 = vmatprep.subr.mxu0 0.0
    %1971 = vmatpush2.msra.mxu0 0.0
    %1972 = vmatprep.subr.mxu0 0.0
    %1973 = vmatpush2.msra.mxu0 0.0
    %1974 = vmatprep.mubr.f32.mxu0 0.0
    %1975 = vmatmul.mubr.f32.gmra.mxu0 %v1815
    %v1976 = vpop.f32.mrf.mxu0
    %v1977 = vadd.f32 %v1812, %v1976
    %v1978 = vpop.f32.mrf.mxu0
    %1979 = vmatprep.mubr.f32.mxu0 0.0
    %1980 = vmatmul.mubr.f32.gmra.mxu0 %v1818
    %v1981 = vpop.f32.mrf.mxu0
    %v1982 = vadd.f32 %v1812, %v1981
    %v1983 = vpop.f32.mrf.mxu0
    %1984 = vmatprep.mubr.f32.mxu0 0.0
    %1985 = vmatmul.mubr.f32.gmra.mxu0 %v1821
    %v1986 = vpop.f32.mrf.mxu0
    %v1987 = vadd.f32 %v1812, %v1986
    %v1988 = vpop.f32.mrf.mxu0
    %1989 = vmatprep.mubr.f32.mxu0 0.0
    %1990 = vmatmul.mubr.f32.gmra.mxu0 %v1824
    %v1991 = vpop.f32.mrf.mxu0
    %v1992 = vadd.f32 %v1812, %v1991
    %v1993 = vpop.f32.mrf.mxu0
    %1994 = vmatprep.mubr.f32.mxu0 0.0
    %1995 = vmatmul.mubr.f32.gmra.mxu0 %v1827
    %v1996 = vpop.f32.mrf.mxu0
    %v1997 = vadd.f32 %v1812, %v1996
    %v1998 = vpop.f32.mrf.mxu0
    %1999 = vmatprep.mubr.f32.mxu0 0.0
    %2000 = vmatmul.mubr.f32.gmra.mxu0 %v1830
    %v2001 = vpop.f32.mrf.mxu0
    %v2002 = vadd.f32 %v1812, %v2001
    %v2003 = vpop.f32.mrf.mxu0
    %2004 = vmatprep.mubr.f32.mxu0 0.0
    %2005 = vmatmul.mubr.f32.gmra.mxu0 %v1833
    %v2006 = vpop.f32.mrf.mxu0
    %v2007 = vadd.f32 %v1812, %v2006
    %v2008 = vpop.f32.mrf.mxu0
    %2009 = vmatprep.mubr.f32.mxu0 0.0
    %2010 = vmatmul.mubr.f32.gmra.mxu0 %v1836
    %v2011 = vpop.f32.mrf.mxu0
    %v2012 = vadd.f32 %v1812, %v2011
    %v2013 = vpop.f32.mrf.mxu0
    %2014 = vmatprep.mubr.f32.mxu0 0.0
    %2015 = vmatmul.mubr.f32.gmra.mxu0 %v1839
    %v2016 = vpop.f32.mrf.mxu0
    %v2017 = vadd.f32 %v1812, %v2016
    %v2018 = vpop.f32.mrf.mxu0
    %2019 = vmatprep.mubr.f32.mxu0 0.0
    %2020 = vmatmul.mubr.f32.gmra.mxu0 %v1842
    %v2021 = vpop.f32.mrf.mxu0
    %v2022 = vadd.f32 %v1812, %v2021
    %v2023 = vpop.f32.mrf.mxu0
    %2024 = vmatprep.mubr.f32.mxu0 0.0
    %2025 = vmatmul.mubr.f32.gmra.mxu0 %v1845
    %v2026 = vpop.f32.mrf.mxu0
    %v2027 = vadd.f32 %v1812, %v2026
    %v2028 = vpop.f32.mrf.mxu0
    %2029 = vmatprep.mubr.f32.mxu0 0.0
    %2030 = vmatmul.mubr.f32.gmra.mxu0 %v1848
    %v2031 = vpop.f32.mrf.mxu0
    %v2032 = vadd.f32 %v1812, %v2031
    %v2033 = vpop.f32.mrf.mxu0
    %2034 = vmatprep.mubr.f32.mxu0 0.0
    %2035 = vmatmul.mubr.f32.gmra.mxu0 %v1851
    %v2036 = vpop.f32.mrf.mxu0
    %v2037 = vadd.f32 %v1812, %v2036
    %v2038 = vpop.f32.mrf.mxu0
    %2039 = vmatprep.mubr.f32.mxu0 0.0
    %2040 = vmatmul.mubr.f32.gmra.mxu0 %v1854
    %v2041 = vpop.f32.mrf.mxu0
    %v2042 = vadd.f32 %v1812, %v2041
    %v2043 = vpop.f32.mrf.mxu0
    %2044 = vmatprep.mubr.f32.mxu0 0.0
    %2045 = vmatmul.mubr.f32.gmra.mxu0 %v1857
    %v2046 = vpop.f32.mrf.mxu0
    %v2047 = vadd.f32 %v1812, %v2046
    %v2048 = vpop.f32.mrf.mxu0
    %2049 = vmatprep.mubr.f32.mxu0 0.0
    %2050 = vmatmul.mubr.f32.gmra.mxu0 %v1860
    %v2051 = vpop.f32.mrf.mxu0
    %v2052 = vadd.f32 %v1812, %v2051
    %v2053 = vpop.f32.mrf.mxu0
    %2054 = vmatprep.mubr.f32.mxu0 0.0
    %2055 = vmatmul.mubr.f32.gmra.mxu0 %v1863
    %v2056 = vpop.f32.mrf.mxu0
    %v2057 = vadd.f32 %v1812, %v2056
    %v2058 = vpop.f32.mrf.mxu0
    %2059 = vmatprep.mubr.f32.mxu0 0.0
    %2060 = vmatmul.mubr.f32.gmra.mxu0 %v1866
    %v2061 = vpop.f32.mrf.mxu0
    %v2062 = vadd.f32 %v1812, %v2061
    %v2063 = vpop.f32.mrf.mxu0
    %2064 = vmatprep.mubr.f32.mxu0 0.0
    %2065 = vmatmul.mubr.f32.gmra.mxu0 %v1869
    %v2066 = vpop.f32.mrf.mxu0
    %v2067 = vadd.f32 %v1812, %v2066
    %v2068 = vpop.f32.mrf.mxu0
    %2069 = vmatprep.mubr.f32.mxu0 0.0
    %2070 = vmatmul.mubr.f32.gmra.mxu0 %v1872
    %v2071 = vpop.f32.mrf.mxu0
    %v2072 = vadd.f32 %v1812, %v2071
    %v2073 = vpop.f32.mrf.mxu0
    %2074 = vmatprep.mubr.f32.mxu0 0.0
    %2075 = vmatmul.mubr.f32.gmra.mxu0 %v1875
    %v2076 = vpop.f32.mrf.mxu0
    %v2077 = vadd.f32 %v1812, %v2076
    %v2078 = vpop.f32.mrf.mxu0
    %2079 = vmatprep.mubr.f32.mxu0 0.0
    %2080 = vmatmul.mubr.f32.gmra.mxu0 %v1878
    %v2081 = vpop.f32.mrf.mxu0
    %v2082 = vadd.f32 %v1812, %v2081
    %v2083 = vpop.f32.mrf.mxu0
    %2084 = vmatprep.mubr.f32.mxu0 0.0
    %2085 = vmatmul.mubr.f32.gmra.mxu0 %v1881
    %v2086 = vpop.f32.mrf.mxu0
    %v2087 = vadd.f32 %v1812, %v2086
    %v2088 = vpop.f32.mrf.mxu0
    %2089 = vmatprep.mubr.f32.mxu0 0.0
    %2090 = vmatmul.mubr.f32.gmra.mxu0 %v1884
    %v2091 = vpop.f32.mrf.mxu0
    %v2092 = vadd.f32 %v1812, %v2091
    %v2093 = vpop.f32.mrf.mxu0
    %2094 = vmatprep.mubr.f32.mxu0 0.0
    %2095 = vmatmul.mubr.f32.gmra.mxu0 %v1887
    %v2096 = vpop.f32.mrf.mxu0
    %v2097 = vadd.f32 %v1812, %v2096
    %v2098 = vpop.f32.mrf.mxu0
    %2099 = vmatprep.mubr.f32.mxu0 0.0
    %2100 = vmatmul.mubr.f32.gmra.mxu0 %v1890
    %v2101 = vpop.f32.mrf.mxu0
    %v2102 = vadd.f32 %v1812, %v2101
    %v2103 = vpop.f32.mrf.mxu0
    %2104 = vmatprep.mubr.f32.mxu0 0.0
    %2105 = vmatmul.mubr.f32.gmra.mxu0 %v1893
    %v2106 = vpop.f32.mrf.mxu0
    %v2107 = vadd.f32 %v1812, %v2106
    %v2108 = vpop.f32.mrf.mxu0
    %2109 = vmatprep.mubr.f32.mxu0 0.0
    %2110 = vmatmul.mubr.f32.gmra.mxu0 %v1896
    %v2111 = vpop.f32.mrf.mxu0
    %v2112 = vadd.f32 %v1812, %v2111
    %v2113 = vpop.f32.mrf.mxu0
    %2114 = vmatprep.mubr.f32.mxu0 0.0
    %2115 = vmatmul.mubr.f32.gmra.mxu0 %v1899
    %v2116 = vpop.f32.mrf.mxu0
    %v2117 = vadd.f32 %v1812, %v2116
    %v2118 = vpop.f32.mrf.mxu0
    %2119 = vmatprep.mubr.f32.mxu0 0.0
    %2120 = vmatmul.mubr.f32.gmra.mxu0 %v1902
    %v2121 = vpop.f32.mrf.mxu0
    %v2122 = vadd.f32 %v1812, %v2121
    %v2123 = vpop.f32.mrf.mxu0
    %2124 = vmatprep.mubr.f32.mxu0 0.0
    %2125 = vmatmul.mubr.f32.gmra.mxu0 %v1905
    %v2126 = vpop.f32.mrf.mxu0
    %v2127 = vadd.f32 %v1812, %v2126
    %v2128 = vpop.f32.mrf.mxu0
    %2129 = vmatprep.mubr.f32.mxu0 0.0
    %2130 = vmatmul.mubr.f32.gmra.mxu0 %v1908
    %v2131 = vpop.f32.mrf.mxu0
    %v2132 = vadd.f32 %v1812, %v2131
    %v2133 = vpop.f32.mrf.mxu0
    %2134 = vdwg.mxu0
    %vm2135 = vcmask 113664
    %2136 = vst.msk [vmem:[%s17] sm:$0xff] %vm2135, %v1977
    %2137 = vst.msk [vmem:[%s17 + $0x8] sm:$0xff] %vm2135, %v1982
    %2138 = vst.msk [vmem:[%s17 + $0x10] sm:$0xff] %vm2135, %v1987
    %2139 = vst.msk [vmem:[%s17 + $0x18] sm:$0xff] %vm2135, %v1992
    %2140 = vst.msk [vmem:[%s17 + $0x20] sm:$0xff] %vm2135, %v1997
    %2141 = vst.msk [vmem:[%s17 + $0x28] sm:$0xff] %vm2135, %v2002
    %2142 = vst.msk [vmem:[%s17 + $0x30] sm:$0xff] %vm2135, %v2007
    %2143 = vst.msk [vmem:[%s17 + $0x38] sm:$0xff] %vm2135, %v2012
    %2144 = vst.msk [vmem:[%s17 + $0x40] sm:$0xff] %vm2135, %v2017
    %2145 = vst.msk [vmem:[%s17 + $0x48] sm:$0xff] %vm2135, %v2022
    %2146 = vst.msk [vmem:[%s17 + $0x50] sm:$0xff] %vm2135, %v2027
    %2147 = vst.msk [vmem:[%s17 + $0x58] sm:$0xff] %vm2135, %v2032
    %2148 = vst.msk [vmem:[%s17 + $0x60] sm:$0xff] %vm2135, %v2037
    %2149 = vst.msk [vmem:[%s17 + $0x68] sm:$0xff] %vm2135, %v2042
    %2150 = vst.msk [vmem:[%s17 + $0x70] sm:$0xff] %vm2135, %v2047
    %2151 = vst.msk [vmem:[%s17 + $0x78] sm:$0xff] %vm2135, %v2052
    %2152 = vst.msk [vmem:[%s17 + $0x80] sm:$0xff] %vm2135, %v2057
    %2153 = vst.msk [vmem:[%s17 + $0x88] sm:$0xff] %vm2135, %v2062
    %2154 = vst.msk [vmem:[%s17 + $0x90] sm:$0xff] %vm2135, %v2067
    %2155 = vst.msk [vmem:[%s17 + $0x98] sm:$0xff] %vm2135, %v2072
    %2156 = vst.msk [vmem:[%s17 + $0xa0] sm:$0xff] %vm2135, %v2077
    %2157 = vst.msk [vmem:[%s17 + $0xa8] sm:$0xff] %vm2135, %v2082
    %2158 = vst.msk [vmem:[%s17 + $0xb0] sm:$0xff] %vm2135, %v2087
    %2159 = vst.msk [vmem:[%s17 + $0xb8] sm:$0xff] %vm2135, %v2092
    %2160 = vst.msk [vmem:[%s17 + $0xc0] sm:$0xff] %vm2135, %v2097
    %2161 = vst.msk [vmem:[%s17 + $0xc8] sm:$0xff] %vm2135, %v2102
    %2162 = vst.msk [vmem:[%s17 + $0xd0] sm:$0xff] %vm2135, %v2107
    %2163 = vst.msk [vmem:[%s17 + $0xd8] sm:$0xff] %vm2135, %v2112
    %2164 = vst.msk [vmem:[%s17 + $0xe0] sm:$0xff] %vm2135, %v2117
    %2165 = vst.msk [vmem:[%s17 + $0xe8] sm:$0xff] %vm2135, %v2122
    %2166 = vst.msk [vmem:[%s17 + $0xf0] sm:$0xff] %vm2135, %v2127
    %2167 = vst.msk [vmem:[%s17 + $0xf8] sm:$0xff] %vm2135, %v2132
    // Predicated region
    $region70: #{ssh_gnn_forward.1} parent=1 // pred_check
      _
    $region71: #{ssh_gnn_forward.1} parent=1 // pred_check_branch
      %2169 = sbr.rel (0) target = $region73
    $region72: #{ssh_gnn_forward.1} parent=1 // pred_region
      _
    $region73: #{ssh_gnn_forward.1} parent=1 // pred_fallthru
      _
    // Predicated region
    $region74: #{ssh_gnn_forward.1} parent=1 // pred_check
      _
    $region75: #{ssh_gnn_forward.1} parent=1 // pred_check_branch
      %2171 = sbr.rel (0) target = $region77
    $region76: #{ssh_gnn_forward.1} parent=1 // pred_region
      %s2173 = ssub.s32 16, 16
      %2174 = vsyncadd [#allocation3], %s2173
      %s2176 = sshll.u32 [#allocation2], 4
      %s2177 = int_to_ptr.vmem [resolvable:$true] %s2176
      %2179 = dma.vmem_to_hbm [thread:$0]  %s2177, 16, %s18, [#allocation3]
    $region77: #{ssh_gnn_forward.1} parent=1 // pred_fallthru
      _
    // Predicated region
    $region78: #{ssh_gnn_forward.1} parent=1 // pred_check
      _
    $region79: #{ssh_gnn_forward.1} parent=1 // pred_check_branch
      %2181 = sbr.rel (0) target = $region81
    $region80: #{ssh_gnn_forward.1} parent=1 // pred_region
      _
    $region81: #{ssh_gnn_forward.1} parent=1 // pred_fallthru
      _
    // Predicated region
    $region82: #{ssh_gnn_forward.1} parent=1 // pred_check
      _
    $region83: #{ssh_gnn_forward.1} parent=1 // pred_check_branch
      %2183 = sbr.rel (0) target = $region85
    $region84: #{ssh_gnn_forward.1} parent=1 // pred_region
      %2184 = dma.done [#allocation3], 16
    $region85: #{ssh_gnn_forward.1} parent=1 // pred_fallthru
      _
    %2185 = vsyncpa [#allocation3], 1

</llo_original>
